<compile_context>
chip_gen: v7x
topology: tpu7x:2x2x1
jax: 0.10.0
libtpu: 0.0.40
codegen_flags: <defaults>
</compile_context>

<pallas_src>
import functools

import jax
import jax.numpy as jnp
from jax.experimental import pallas as pl
from jax.experimental.pallas import tpu as pltpu


def class_attention_kernel(cls_ref, pch_ref, wq_ref, wkv_ref, wp_ref, bp_ref,
                           out_ref, *, num_heads):
    """One batch block per grid step.

    cls_ref:  (bb, Nq, C)    query-token source (compute dtype, e.g. bf16)
    pch_ref:  (bb, Np, C)    extra tokens; keys/values come from cat(cls, pch)
    wq_ref:   (C, C)         scale * Wq^T (natural head-major output columns)
    wkv_ref:  (C, 2C)        fused [Wk^T | Wv^T], columns grouped per head [h: k|v]
    wp_ref:   (C, C)         Wproj^T
    bp_ref:   (1, C)         proj bias (f32)
    out_ref:  (bb*Nq, C)
    """
    bb, Nq, C = cls_ref.shape
    Np = pch_ref.shape[1]
    Nk = Nq + Np
    H = num_heads
    hd = C // H
    g = 2 * hd                       # per-head [k | v] column group width
    f32 = jnp.float32

    cls = cls_ref[...]                                            # (bb, Nq, C)
    # x = cat([cls, pch], dim=tokens) built in VMEM (no HBM concat).
    x = jnp.concatenate([cls, pch_ref[...]], axis=1)              # (bb, Nk, C)
    cls2 = cls.reshape(bb * Nq, C)
    x2 = x.reshape(bb * Nk, C)

    # Projections on the MXU (bf16 operands, f32 accumulation).
    # q only for the cls rows (scale pre-folded); k/v fused for all tokens.
    q2 = jnp.dot(cls2, wq_ref[...], preferred_element_type=f32)   # (bb*Nq, C)
    kv2 = jnp.dot(x2, wkv_ref[...], preferred_element_type=f32)   # (bb*Nk, 2C)

    # Head split: small per-head lane slices + leading-axis stack, then fold the
    # head axis into the batch axis so the attention contractions are plain 3-D
    # batched matmuls (z = h*bb + b).  This replaces the previous full-size qkv
    # slice + concat relayout.
    q = jnp.stack([q2[:, h * hd:(h + 1) * hd] for h in range(H)], axis=0)
    q = q.reshape(H * bb, Nq, hd)                                 # (z, Nq, hd)
    kvh = jnp.stack([kv2[:, h * g:(h + 1) * g] for h in range(H)], axis=0)
    kvh = kvh.reshape(H * bb, Nk, g)                              # (z, Nk, 2hd)
    k = kvh[:, :, :hd]                                            # (z, Nk, hd)
    v = kvh[:, :, hd:]                                            # (z, Nk, hd)

    # Attention logits without materializing k^T (contract the last axes); f32.
    s = jnp.einsum('zqd,zkd->zqk', q, k, preferred_element_type=f32)  # (z,Nq,Nk)
    m = jnp.max(s, axis=-1, keepdims=True)
    p = jnp.exp(s - m)
    denom = jnp.sum(p, axis=-1, keepdims=True)
    # TODO(synk): attn_drop / proj_drop are Dropout(p=0.0) -> identity, skipped.
    o = jnp.einsum('zqk,zkd->zqd', p, v, preferred_element_type=f32)  # (z,Nq,hd)
    # Deferred softmax normalization on the small tensor; approx recip -> EUP slot.
    o = o * pl.reciprocal(denom, approx=True)

    # Merge the heads back into lanes (small (bb*Nq, C) tensor) and run a SINGLE
    # K=C output projection instead of the per-head K=hd accumulation loop.
    o2 = jnp.concatenate(
        [o[h * bb:(h + 1) * bb].reshape(bb * Nq, hd) for h in range(H)], axis=-1)
    out = jnp.dot(o2.astype(wp_ref.dtype), wp_ref[...],
                  preferred_element_type=f32)                     # (bb*Nq, C)
    out_ref[...] = (out + bp_ref[...]).astype(out_ref.dtype)


def _choose_batch_blocks(B, Nq, Nk, C, num_heads,
                         vmem_budget_bytes=8 << 20, min_rows_per_block=256):
    """Number of grid steps along the batch axis.

    Derived from the problem size only (no trace-time device inspection): keep a
    single step unless the per-step live intermediates exceed a conservative VMEM
    budget AND each half would still have enough query rows to amortize the
    ~0.35 us/step overhead and the re-fetched weights.
    """
    def live_bytes(bb):
        rows_q, rows_kv = bb * Nq, bb * Nk
        b = rows_kv * C * 2                        # bf16 x = cat(cls, pch)
        b += rows_kv * 2 * C * 4                   # f32 kv projection
        b += rows_q * C * 4                        # f32 q projection
        b += (rows_kv * 2 * C + rows_q * C) * 4    # head-stacked q/k/v copies
        b += num_heads * bb * Nq * Nk * 4 * 2      # logits + exp
        b += rows_q * C * 4 * 2                    # o + lane-merged o2
        return b

    nb = 1
    while (B % (2 * nb) == 0
           and live_bytes(B // nb) > vmem_budget_bytes
           and (B // (2 * nb)) * Nq >= min_rows_per_block
           and ((B // (2 * nb)) * Nq) % 8 == 0):
        nb *= 2
    return nb


def class_attention_pallas(cls, pch, params, num_heads,
                           compute_dtype=jnp.bfloat16):
    B, Hp, Wp, C = cls.shape
    Hq = pch.shape[1]
    Nq = Hp * Wp
    Np = Hq * Wp
    Nk = Nq + Np
    hd = C // num_heads
    scale = hd ** (-0.5)
    out_dtype = cls.dtype

    # Cast activations to the (bf16) compute dtype -> halves input DMA bytes.
    cls_f = cls.reshape(B, Nq, C).astype(compute_dtype)
    pch_f = pch.reshape(B, Np, C).astype(compute_dtype)

    # PyTorch Linear stores W as (out, in); the kernel computes x @ W^T.
    # q weight: softmax scale folded in, columns stay in natural head-major order.
    wq_s = (params["wq"].T * scale).astype(compute_dtype)           # (C, C)
    # k/v fused into one (C, 2C) matrix with per-head column groups [h: k|v].
    wkv = jnp.concatenate(
        [params["wk"].T.reshape(C, num_heads, hd),
         params["wv"].T.reshape(C, num_heads, hd)],
        axis=-1).reshape(C, 2 * C).astype(compute_dtype)            # (C, 2C)
    wp_t = params["wp"].T.astype(compute_dtype)                     # (C, C)
    bp = params["bp"].reshape(1, C).astype(jnp.float32)

    nb = _choose_batch_blocks(B, Nq, Nk, C, num_heads)   # 1 at this problem size
    bb = B // nb

    kernel = functools.partial(class_attention_kernel, num_heads=num_heads)

    out = pl.pallas_call(
        kernel,
        out_shape=jax.ShapeDtypeStruct((B * Nq, C), out_dtype),
        grid_spec=pltpu.PrefetchScalarGridSpec(
            num_scalar_prefetch=0,
            grid=(nb,),
            in_specs=[
                pl.BlockSpec((bb, Nq, C), lambda i: (i, 0, 0)),   # cls tokens
                pl.BlockSpec((bb, Np, C), lambda i: (i, 0, 0)),   # pch tokens
                pl.BlockSpec((C, C), lambda i: (0, 0)),           # scaled Wq^T
                pl.BlockSpec((C, 2 * C), lambda i: (0, 0)),       # fused Wkv^T
                pl.BlockSpec((C, C), lambda i: (0, 0)),           # Wproj^T
                pl.BlockSpec((1, C), lambda i: (0, 0)),           # proj bias
            ],
            out_specs=pl.BlockSpec((bb * Nq, C), lambda i: (i, 0)),
        ),
        compiler_params=pltpu.CompilerParams(
            dimension_semantics=("parallel",),
            vmem_limit_bytes=32 * 1024 * 1024),
    )(cls_f, pch_f, wq_s, wkv, wp_t, bp)

    return out.reshape(B, Hp, Wp, C)


def class_attention_reference(cls, pch, params, num_heads):
    """Pure-JAX f32 mirror of the PyTorch forward (for correctness check)."""
    B, Hp, Wp, C = cls.shape
    hd = C // num_heads
    scale = hd ** (-0.5)
    x = jnp.concatenate([cls, pch], axis=1)
    q = (cls.reshape(B, -1, C) @ params["wq"].T).reshape(
        B, -1, num_heads, hd).transpose(2, 0, 1, 3) * scale
    k = (x.reshape(B, -1, C) @ params["wk"].T).reshape(
        B, -1, num_heads, hd).transpose(2, 0, 1, 3)
    v = (x.reshape(B, -1, C) @ params["wv"].T).reshape(
        B, -1, num_heads, hd).transpose(2, 0, 1, 3)
    attn = jax.nn.softmax(q @ jnp.swapaxes(k, -2, -1), axis=-1)
    x_cls = (attn @ v)                                   # (H, B, Nq, hd)
    x_cls = x_cls.transpose(1, 2, 0, 3).reshape(B, Hp, Wp, C)
    return x_cls @ params["wp"].T + params["bp"]


if __name__ == "__main__":
    # Small shapes consistent with the module: dim=32, num_heads=4 (head_dim=8)
    B, Hp, Wp, C = 2, 2, 4, 32
    Hq = 4                      # pch "height" (extra tokens along dim=1)
    num_heads = 4

    key = jax.random.PRNGKey(0)
    k_cls, k_pch, kq, kk, kv, kp, kb = jax.random.split(key, 7)

    cls = jax.random.normal(k_cls, (B, Hp, Wp, C), dtype=jnp.float32)
    pch = jax.random.normal(k_pch, (B, Hq, Wp, C), dtype=jnp.float32)

    # Deterministic synthetic parameters (PyTorch Linear shapes: (out, in)).
    s = 0.05
    params = {
        "wq": s * jax.random.normal(kq, (C, C), dtype=jnp.float32),
        "wk": s * jax.random.normal(kk, (C, C), dtype=jnp.float32),
        "wv": s * jax.random.normal(kv, (C, C), dtype=jnp.float32),
        "wp": s * jax.random.normal(kp, (C, C), dtype=jnp.float32),
        "bp": s * jax.random.normal(kb, (C,), dtype=jnp.float32),
    }

    out = class_attention_pallas(cls, pch, params, num_heads)
    out = jax.block_until_ready(out)

    ref = class_attention_reference(cls, pch, params, num_heads)
    assert out.shape == (B, Hp, Wp, C)
    # Tolerance relaxed vs the f32 reference because the projections run with
    # bf16 operands (f32 accumulation / softmax), per the performance review.
    assert jnp.allclose(out, ref, rtol=2e-2, atol=2e-2), (
        "mismatch vs reference: max abs err = "
        f"{jnp.max(jnp.abs(out - ref))}")

    print("KERNEL_OK")
</pallas_src>

<mosaic_0001>
module attributes {stable_mosaic.version = 11 : i64} {
  func.func @class_attention_kernel(%arg0: i32, %arg1: memref<2x8x32xbf16, #tpu.memory_space<vmem>>, %arg2: memref<2x16x32xbf16, #tpu.memory_space<vmem>>, %arg3: memref<32x32xbf16, #tpu.memory_space<vmem>>, %arg4: memref<32x64xbf16, #tpu.memory_space<vmem>>, %arg5: memref<32x32xbf16, #tpu.memory_space<vmem>>, %arg6: memref<1x32xf32, #tpu.memory_space<vmem>>, %arg7: memref<16x32xf32, #tpu.memory_space<vmem>>) attributes {dimension_semantics = [#tpu.dimension_semantics<parallel>], iteration_bounds = array<i64: 1>, scalar_prefetch = 0 : i64, scratch_operands = 0 : i64, tpu.core_type = #tpu.core_type<tc>, window_params = [{transform_indices = @transform_0, window_bounds = array<i64: 2, 8, 32>}, {transform_indices = @transform_1, window_bounds = array<i64: 2, 16, 32>}, {pipeline_mode = #tpu.pipeline_mode<synchronous>, transform_indices = @transform_2, window_bounds = array<i64: 32, 32>}, {pipeline_mode = #tpu.pipeline_mode<synchronous>, transform_indices = @transform_3, window_bounds = array<i64: 32, 64>}, {pipeline_mode = #tpu.pipeline_mode<synchronous>, transform_indices = @transform_4, window_bounds = array<i64: 32, 32>}, {pipeline_mode = #tpu.pipeline_mode<synchronous>, transform_indices = @transform_5, window_bounds = array<i64: 1, 32>}, {transform_indices = @transform_6, window_bounds = array<i64: 16, 32>}]} {
    %c0 = arith.constant 0 : index
    %c0_0 = arith.constant 0 : index
    %c0_1 = arith.constant 0 : index
    %0 = vector.load %arg1[%c0, %c0_0, %c0_1] : memref<2x8x32xbf16, #tpu.memory_space<vmem>>, vector<2x8x32xbf16>
    %c0_2 = arith.constant 0 : index
    %c0_3 = arith.constant 0 : index
    %c0_4 = arith.constant 0 : index
    %1 = vector.load %arg2[%c0_2, %c0_3, %c0_4] : memref<2x16x32xbf16, #tpu.memory_space<vmem>>, vector<2x16x32xbf16>
    %2 = tpu.concatenate %0, %1 in 1 : vector<2x8x32xbf16>, vector<2x16x32xbf16> -> vector<2x24x32xbf16>
    %3 = vector.shape_cast %0 : vector<2x8x32xbf16> to vector<16x32xbf16>
    %4 = vector.shape_cast %2 : vector<2x24x32xbf16> to vector<48x32xbf16>
    %c0_5 = arith.constant 0 : index
    %c0_6 = arith.constant 0 : index
    %5 = vector.load %arg3[%c0_5, %c0_6] : memref<32x32xbf16, #tpu.memory_space<vmem>>, vector<32x32xbf16>
    %cst = arith.constant dense<0.000000e+00> : vector<16x32xf32>
    %6 = tpu.matmul %3, %5, %cst {dimension_numbers = #tpu.dot_dimension_numbers<[1], [0], [0], [1], [0, 0, 1, 1], [], []>} : vector<16x32xbf16>, vector<32x32xbf16>, vector<16x32xf32> -> vector<16x32xf32>
    %c0_7 = arith.constant 0 : index
    %c0_8 = arith.constant 0 : index
    %7 = vector.load %arg4[%c0_7, %c0_8] : memref<32x64xbf16, #tpu.memory_space<vmem>>, vector<32x64xbf16>
    %cst_9 = arith.constant dense<0.000000e+00> : vector<48x64xf32>
    %8 = tpu.matmul %4, %7, %cst_9 {dimension_numbers = #tpu.dot_dimension_numbers<[1], [0], [0], [1], [0, 0, 1, 1], [], []>} : vector<48x32xbf16>, vector<32x64xbf16>, vector<48x64xf32> -> vector<48x64xf32>
    %9 = vector.extract_strided_slice %6 {offsets = [0, 0], sizes = [16, 8], strides = [1, 1]} : vector<16x32xf32> to vector<16x8xf32>
    %10 = vector.extract_strided_slice %6 {offsets = [0, 8], sizes = [16, 8], strides = [1, 1]} : vector<16x32xf32> to vector<16x8xf32>
    %11 = vector.extract_strided_slice %6 {offsets = [0, 16], sizes = [16, 8], strides = [1, 1]} : vector<16x32xf32> to vector<16x8xf32>
    %12 = vector.extract_strided_slice %6 {offsets = [0, 24], sizes = [16, 8], strides = [1, 1]} : vector<16x32xf32> to vector<16x8xf32>
    %13 = vector.shape_cast %9 : vector<16x8xf32> to vector<1x16x8xf32>
    %14 = vector.shape_cast %10 : vector<16x8xf32> to vector<1x16x8xf32>
    %15 = vector.shape_cast %11 : vector<16x8xf32> to vector<1x16x8xf32>
    %16 = vector.shape_cast %12 : vector<16x8xf32> to vector<1x16x8xf32>
    %17 = tpu.concatenate %13, %14, %15, %16 in 0 : vector<1x16x8xf32>, vector<1x16x8xf32>, vector<1x16x8xf32>, vector<1x16x8xf32> -> vector<4x16x8xf32>
    %18 = vector.shape_cast %17 : vector<4x16x8xf32> to vector<8x8x8xf32>
    %19 = vector.extract_strided_slice %8 {offsets = [0, 0], sizes = [48, 16], strides = [1, 1]} : vector<48x64xf32> to vector<48x16xf32>
    %20 = vector.extract_strided_slice %8 {offsets = [0, 16], sizes = [48, 16], strides = [1, 1]} : vector<48x64xf32> to vector<48x16xf32>
    %21 = vector.extract_strided_slice %8 {offsets = [0, 32], sizes = [48, 16], strides = [1, 1]} : vector<48x64xf32> to vector<48x16xf32>
    %22 = vector.extract_strided_slice %8 {offsets = [0, 48], sizes = [48, 16], strides = [1, 1]} : vector<48x64xf32> to vector<48x16xf32>
    %23 = vector.shape_cast %19 : vector<48x16xf32> to vector<1x48x16xf32>
    %24 = vector.shape_cast %20 : vector<48x16xf32> to vector<1x48x16xf32>
    %25 = vector.shape_cast %21 : vector<48x16xf32> to vector<1x48x16xf32>
    %26 = vector.shape_cast %22 : vector<48x16xf32> to vector<1x48x16xf32>
    %27 = tpu.concatenate %23, %24, %25, %26 in 0 : vector<1x48x16xf32>, vector<1x48x16xf32>, vector<1x48x16xf32>, vector<1x48x16xf32> -> vector<4x48x16xf32>
    %28 = vector.shape_cast %27 : vector<4x48x16xf32> to vector<8x24x16xf32>
    %29 = vector.extract_strided_slice %28 {offsets = [0, 0, 0], sizes = [8, 24, 8], strides = [1, 1, 1]} : vector<8x24x16xf32> to vector<8x24x8xf32>
    %30 = vector.extract_strided_slice %28 {offsets = [0, 0, 8], sizes = [8, 24, 8], strides = [1, 1, 1]} : vector<8x24x16xf32> to vector<8x24x8xf32>
    "tpu.trace_start"() <{level = 10 : i32, message = "zqd,zkd->zqk"}> : () -> ()
    %cst_10 = arith.constant dense<0.000000e+00> : vector<8x8x24xf32>
    %31 = tpu.matmul %18, %29, %cst_10 {dimension_numbers = #tpu.dot_dimension_numbers<[2], [2], [1], [1], [0, 0, 0, 1, 1, 1], [0], [0]>} : vector<8x8x8xf32>, vector<8x24x8xf32>, vector<8x8x24xf32> -> vector<8x8x24xf32>
    "tpu.trace_stop"() : () -> ()
    %cst_11 = arith.constant dense<0xFF800000> : vector<8x8xf32>
    %32 = vector.multi_reduction <maximumf>, %31, %cst_11 [2] : vector<8x8x24xf32> to vector<8x8xf32>
    %33 = vector.shape_cast %32 : vector<8x8xf32> to vector<8x8x1xf32>
    %34 = vector.broadcast %33 : vector<8x8x1xf32> to vector<8x8x24xf32>
    %35 = arith.subf %31, %34 : vector<8x8x24xf32>
    %36 = math.exp %35 : vector<8x8x24xf32>
    %cst_12 = arith.constant dense<0.000000e+00> : vector<8x8xf32>
    %37 = vector.multi_reduction <add>, %36, %cst_12 [2] : vector<8x8x24xf32> to vector<8x8xf32>
    %38 = vector.shape_cast %37 : vector<8x8xf32> to vector<8x8x1xf32>
    "tpu.trace_start"() <{level = 10 : i32, message = "zqk,zkd->zqd"}> : () -> ()
    %cst_13 = arith.constant dense<0.000000e+00> : vector<8x8x8xf32>
    %39 = tpu.matmul %36, %30, %cst_13 {dimension_numbers = #tpu.dot_dimension_numbers<[2], [1], [1], [2], [0, 0, 0, 1, 1, 2], [0], [0]>} : vector<8x8x24xf32>, vector<8x24x8xf32>, vector<8x8x8xf32> -> vector<8x8x8xf32>
    "tpu.trace_stop"() : () -> ()
    %40 = tpu.reciprocal %38 {approx = true} : vector<8x8x1xf32> -> vector<8x8x1xf32>
    %41 = vector.broadcast %40 : vector<8x8x1xf32> to vector<8x8x8xf32>
    %42 = arith.mulf %39, %41 : vector<8x8x8xf32>
    %43 = vector.extract_strided_slice %42 {offsets = [0, 0, 0], sizes = [2, 8, 8], strides = [1, 1, 1]} : vector<8x8x8xf32> to vector<2x8x8xf32>
    %44 = vector.shape_cast %43 : vector<2x8x8xf32> to vector<16x8xf32>
    %45 = vector.extract_strided_slice %42 {offsets = [2, 0, 0], sizes = [2, 8, 8], strides = [1, 1, 1]} : vector<8x8x8xf32> to vector<2x8x8xf32>
    %46 = vector.shape_cast %45 : vector<2x8x8xf32> to vector<16x8xf32>
    %47 = vector.extract_strided_slice %42 {offsets = [4, 0, 0], sizes = [2, 8, 8], strides = [1, 1, 1]} : vector<8x8x8xf32> to vector<2x8x8xf32>
    %48 = vector.shape_cast %47 : vector<2x8x8xf32> to vector<16x8xf32>
    %49 = vector.extract_strided_slice %42 {offsets = [6, 0, 0], sizes = [2, 8, 8], strides = [1, 1, 1]} : vector<8x8x8xf32> to vector<2x8x8xf32>
    %50 = vector.shape_cast %49 : vector<2x8x8xf32> to vector<16x8xf32>
    %51 = tpu.concatenate %44, %46, %48, %50 in 1 : vector<16x8xf32>, vector<16x8xf32>, vector<16x8xf32>, vector<16x8xf32> -> vector<16x32xf32>
    %52 = arith.truncf %51 : vector<16x32xf32> to vector<16x32xbf16>
    %c0_14 = arith.constant 0 : index
    %c0_15 = arith.constant 0 : index
    %53 = vector.load %arg5[%c0_14, %c0_15] : memref<32x32xbf16, #tpu.memory_space<vmem>>, vector<32x32xbf16>
    %cst_16 = arith.constant dense<0.000000e+00> : vector<16x32xf32>
    %54 = tpu.matmul %52, %53, %cst_16 {dimension_numbers = #tpu.dot_dimension_numbers<[1], [0], [0], [1], [0, 0, 1, 1], [], []>} : vector<16x32xbf16>, vector<32x32xbf16>, vector<16x32xf32> -> vector<16x32xf32>
    %c0_17 = arith.constant 0 : index
    %c0_18 = arith.constant 0 : index
    %55 = vector.load %arg6[%c0_17, %c0_18] : memref<1x32xf32, #tpu.memory_space<vmem>>, vector<1x32xf32>
    %56 = vector.broadcast %55 : vector<1x32xf32> to vector<16x32xf32>
    %57 = arith.addf %54, %56 : vector<16x32xf32>
    %c0_19 = arith.constant 0 : index
    %c0_20 = arith.constant 0 : index
    %58 = vector.load %arg7[%c0_19, %c0_20] : memref<16x32xf32, #tpu.memory_space<vmem>>, vector<16x32xf32>
    tpu.vector_store %arg7[%c0_19, %c0_20], %57 {strides = array<i32>} : memref<16x32xf32, #tpu.memory_space<vmem>>, vector<16x32xf32>,
    return
  }
  func.func @transform_0(%arg0: i32) -> (i32, i32, i32) {
    %c0_i32 = arith.constant 0 : i32
    %c0_i32_0 = arith.constant 0 : i32
    %c0_i32_1 = arith.constant 0 : i32
    return %arg0, %c0_i32, %c0_i32_0 : i32, i32, i32
  }
  func.func @transform_1(%arg0: i32) -> (i32, i32, i32) {
    %c0_i32 = arith.constant 0 : i32
    %c0_i32_0 = arith.constant 0 : i32
    %c0_i32_1 = arith.constant 0 : i32
    return %arg0, %c0_i32, %c0_i32_0 : i32, i32, i32
  }
  func.func @transform_2(%arg0: i32) -> (i32, i32) {
    %c0_i32 = arith.constant 0 : i32
    %c0_i32_0 = arith.constant 0 : i32
    %c0_i32_1 = arith.constant 0 : i32
    return %c0_i32, %c0_i32_0 : i32, i32
  }
  func.func @transform_3(%arg0: i32) -> (i32, i32) {
    %c0_i32 = arith.constant 0 : i32
    %c0_i32_0 = arith.constant 0 : i32
    %c0_i32_1 = arith.constant 0 : i32
    return %c0_i32, %c0_i32_0 : i32, i32
  }
  func.func @transform_4(%arg0: i32) -> (i32, i32) {
    %c0_i32 = arith.constant 0 : i32
    %c0_i32_0 = arith.constant 0 : i32
    %c0_i32_1 = arith.constant 0 : i32
    return %c0_i32, %c0_i32_0 : i32, i32
  }
  func.func @transform_5(%arg0: i32) -> (i32, i32) {
    %c0_i32 = arith.constant 0 : i32
    %c0_i32_0 = arith.constant 0 : i32
    %c0_i32_1 = arith.constant 0 : i32
    return %c0_i32, %c0_i32_0 : i32, i32
  }
  func.func @transform_6(%arg0: i32) -> (i32, i32) {
    %c0_i32 = arith.constant 0 : i32
    %c0_i32_0 = arith.constant 0 : i32
    return %arg0, %c0_i32 : i32, i32
  }
}

</mosaic_0001>

<llo_original>
// kernel: tpu_custom_call.1
$region0: #{tpu_custom_call.1}
  #allocation0 [shape = 'u32[]', space=smem, size = 0x4, offset = 0x4, fixed_abs, tag = 'smem constant byte address 0x4 - core index']
  #allocation1 [shape = 'u32[144,128]{1,0:T(1,128)}', space=vmem, size = 0x12000, scoped, tag = 'internal scratch']
  %s0 = inlined_call_operand.hbm [shape: bf16[2,8,32], index: 0, kind: input, shape index: {}]
  %s1 = inlined_call_operand.hbm [shape: bf16[2,16,32], index: 1, kind: input, shape index: {}]
  %s2 = inlined_call_operand.hbm [shape: bf16[32,32], index: 2, kind: input, shape index: {}]
  %s3 = inlined_call_operand.hbm [shape: bf16[32,64], index: 3, kind: input, shape index: {}]
  %s4 = inlined_call_operand.hbm [shape: bf16[32,32], index: 4, kind: input, shape index: {}]
  %s5 = inlined_call_operand.vmem [shape: f32[1,32], index: 5, kind: input, shape index: {}]
  %s6 = inlined_call_operand.hbm [shape: f32[16,32], index: 6, kind: output, shape index: {}]
  %s7 = sld [smem:[#allocation0]]
  $region54: #{tpu_custom_call.1} parent=0
    _
  %s9 = ssub.s32 1, %s7
  %s10 = scalar_select 0, %s9, %s7
  $region1: #{tpu_custom_call.1} parent=0
    #allocation2 [shape = 'u8[4096]{0}', space=vmem, size = 0x1000, scoped, tag = 'input window, operand 0, single buffered']
    #allocation3 [shape = 's32[1]{0}', space=sflag, size = 0x4, scoped, tag = 'scoped memory for tpu_custom_call.1']
    #allocation4 [shape = 's32[1]{0}', space=sflag, size = 0x4, scoped, tag = 'scoped memory for tpu_custom_call.1']
    #allocation5 [shape = 'u8[8192]{0}', space=vmem, size = 0x2000, scoped, tag = 'input window, operand 1, single buffered']
    #allocation6 [shape = 's32[1]{0}', space=sflag, size = 0x4, scoped, tag = 'scoped memory for tpu_custom_call.1']
    #allocation7 [shape = 'u8[8192]{0}', space=vmem, size = 0x2000, scoped, tag = 'input window, operand 2, single buffered']
    #allocation8 [shape = 'u8[8192]{0}', space=vmem, size = 0x2000, scoped, tag = 'input window, operand 3, single buffered']
    #allocation9 [shape = 's32[1]{0}', space=sflag, size = 0x4, scoped, tag = 'scoped memory for tpu_custom_call.1']
    #allocation10 [shape = 'u8[8192]{0}', space=vmem, size = 0x2000, scoped, tag = 'input window, operand 4, single buffered']
    #allocation11 [shape = 'u8[8192]{0}', space=vmem, size = 0x2000, scoped, tag = 'output window, operand 0, single buffered']
    %11 = vsyncpa [#allocation3], 0
    %12 = vsyncpa [#allocation6], 0
    %13 = vsyncpa [#allocation9], 0
    %14 = vsyncpa [#allocation4], 0
    // Predicated region
    $region2: #{tpu_custom_call.1} parent=1 // pred_check
      _
    $region3: #{tpu_custom_call.1} parent=1 // pred_check_branch
      %16 = sbr.rel (0) target = $region5
    $region4: #{tpu_custom_call.1} parent=1 // pred_region
      %s18 = ssub.s32 128, 128
      %19 = vsyncadd [#allocation3], %s18
      %s20 = sshll.u32 [#allocation2], 4
      %s21 = int_to_ptr.vmem [resolvable:$true] %s20
      %26 = dma.hbm_to_vmem [thread:$0]  %s0, 128, %s21, [#allocation3], 64, 64, 4
    $region5: #{tpu_custom_call.1} parent=1 // pred_fallthru
      _
    // Predicated region
    $region6: #{tpu_custom_call.1} parent=1 // pred_check
      _
    $region7: #{tpu_custom_call.1} parent=1 // pred_check_branch
      %28 = sbr.rel (0) target = $region9
    $region8: #{tpu_custom_call.1} parent=1 // pred_region
      %s30 = ssub.s32 256, 256
      %31 = vsyncadd [#allocation6], %s30
      %s32 = sshll.u32 [#allocation5], 4
      %s33 = int_to_ptr.vmem [resolvable:$true] %s32
      %38 = dma.hbm_to_vmem [thread:$0]  %s1, 256, %s33, [#allocation6], 64, 64, 4
    $region9: #{tpu_custom_call.1} parent=1 // pred_fallthru
      _
    // Predicated region
    $region10: #{tpu_custom_call.1} parent=1 // pred_check
      _
    $region11: #{tpu_custom_call.1} parent=1 // pred_check_branch
      %40 = sbr.rel (0) target = $region13
    $region12: #{tpu_custom_call.1} parent=1 // pred_region
      %s42 = ssub.s32 256, 256
      %43 = vsyncadd [#allocation6], %s42
      %s44 = sshll.u32 [#allocation7], 4
      %s45 = int_to_ptr.vmem [resolvable:$true] %s44
      %50 = dma.hbm_to_vmem [thread:$0]  %s2, 256, %s45, [#allocation6], 64, 64, 4
    $region13: #{tpu_custom_call.1} parent=1 // pred_fallthru
      _
    // Predicated region
    $region14: #{tpu_custom_call.1} parent=1 // pred_check
      _
    $region15: #{tpu_custom_call.1} parent=1 // pred_check_branch
      %52 = sbr.rel (0) target = $region17
    $region16: #{tpu_custom_call.1} parent=1 // pred_region
      %s54 = ssub.s32 256, 256
      %55 = vsyncadd [#allocation9], %s54
      %s56 = sshll.u32 [#allocation8], 4
      %s57 = int_to_ptr.vmem [resolvable:$true] %s56
      %62 = dma.hbm_to_vmem [thread:$0]  %s3, 256, %s57, [#allocation9], 64, 64, 4
    $region17: #{tpu_custom_call.1} parent=1 // pred_fallthru
      _
    // Predicated region
    $region18: #{tpu_custom_call.1} parent=1 // pred_check
      _
    $region19: #{tpu_custom_call.1} parent=1 // pred_check_branch
      %64 = sbr.rel (0) target = $region21
    $region20: #{tpu_custom_call.1} parent=1 // pred_region
      %s66 = ssub.s32 256, 256
      %67 = vsyncadd [#allocation9], %s66
      %s68 = sshll.u32 [#allocation10], 4
      %s69 = int_to_ptr.vmem [resolvable:$true] %s68
      %74 = dma.hbm_to_vmem [thread:$0]  %s4, 256, %s69, [#allocation9], 64, 64, 4
    $region21: #{tpu_custom_call.1} parent=1 // pred_fallthru
      _
    // Predicated region
    $region22: #{tpu_custom_call.1} parent=1 // pred_check
      _
    $region23: #{tpu_custom_call.1} parent=1 // pred_check_branch
      %76 = sbr.rel (0) target = $region25
    $region24: #{tpu_custom_call.1} parent=1 // pred_region
      _
    $region25: #{tpu_custom_call.1} parent=1 // pred_fallthru
      _
    // Predicated region
    $region26: #{tpu_custom_call.1} parent=1 // pred_check
      _
    $region27: #{tpu_custom_call.1} parent=1 // pred_check_branch
      %78 = sbr.rel (0) target = $region29
    $region28: #{tpu_custom_call.1} parent=1 // pred_region
      %79 = dma.done [#allocation3], 128
    $region29: #{tpu_custom_call.1} parent=1 // pred_fallthru
      _
    // Predicated region
    $region30: #{tpu_custom_call.1} parent=1 // pred_check
      _
    $region31: #{tpu_custom_call.1} parent=1 // pred_check_branch
      %81 = sbr.rel (0) target = $region33
    $region32: #{tpu_custom_call.1} parent=1 // pred_region
      %82 = dma.done [#allocation6], 256
    $region33: #{tpu_custom_call.1} parent=1 // pred_fallthru
      _
    // Predicated region
    $region34: #{tpu_custom_call.1} parent=1 // pred_check
      _
    $region35: #{tpu_custom_call.1} parent=1 // pred_check_branch
      %84 = sbr.rel (0) target = $region37
    $region36: #{tpu_custom_call.1} parent=1 // pred_region
      %85 = dma.done [#allocation6], 256
    $region37: #{tpu_custom_call.1} parent=1 // pred_fallthru
      _
    // Predicated region
    $region38: #{tpu_custom_call.1} parent=1 // pred_check
      _
    $region39: #{tpu_custom_call.1} parent=1 // pred_check_branch
      %87 = sbr.rel (0) target = $region41
    $region40: #{tpu_custom_call.1} parent=1 // pred_region
      %88 = dma.done [#allocation9], 256
    $region41: #{tpu_custom_call.1} parent=1 // pred_fallthru
      _
    // Predicated region
    $region42: #{tpu_custom_call.1} parent=1 // pred_check
      _
    $region43: #{tpu_custom_call.1} parent=1 // pred_check_branch
      %90 = sbr.rel (0) target = $region45
    $region44: #{tpu_custom_call.1} parent=1 // pred_region
      %91 = dma.done [#allocation9], 256
    $region45: #{tpu_custom_call.1} parent=1 // pred_fallthru
      _
    %v93 = vld [vmem:[#allocation2] sm:$0xf]
    %v94 = vld [vmem:[#allocation2 + $0x4] sm:$0xf]
    %v95 = vld [vmem:[#allocation5] sm:$0xf]
    %v96 = vld [vmem:[#allocation5 + $0x4] sm:$0xf]
    %v97 = vld [vmem:[#allocation5 + $0x8] sm:$0xf]
    %v98 = vld [vmem:[#allocation5 + $0xc] sm:$0xf]
    %v103 = vunpack.c.l.b16 %v95
    %v104 = vunpack.c.l.b16 %v96
    %v105 = vunpack.c.l.b16 %v97
    %v106 = vunpack.c.l.b16 %v98
    %v107 = vpack.c.b16 %v103, %v103
    %v108 = vpack.c.b16 %v105, %v105
    %vm109 = vcmask 1043456
    %v112 = vsel %vm109, %v93, %v107
    %v115 = vsel %vm109, %v94, %v108
    %v118 = vunpack.c.l.b16 %v112
    %v119 = vunpack.c.h.b16 %v112
    %v120 = vunpack.c.l.b16 %v115
    %v121 = vunpack.c.h.b16 %v115
    %v122 = vld [vmem:[#allocation7] sm:$0xf]
    %v123 = vld [vmem:[#allocation7 + $0x4] sm:$0xf]
    %v124 = vld [vmem:[#allocation7 + $0x8] sm:$0xf]
    %v125 = vld [vmem:[#allocation7 + $0xc] sm:$0xf]
    %v128 = vunpack.c.l.b16 %v93
    %v129 = vunpack.c.l.b16 %v94
    %v130 = vpack.c.b16 %v129, %v128
    %v135 = vunpack.c.l.b16 %v122
    %v136 = vunpack.c.l.b16 %v123
    %v137 = vunpack.c.l.b16 %v124
    %v138 = vunpack.c.l.b16 %v125
    %v139 = vpack.c.b16 %v136, %v135
    %v140 = vpack.c.b16 %v138, %v137
    %vm143 = vcmask 261120
    %v145 = vsel %vm143, %v130, 0
    %147 = vmatprep.subr.bf16.mxu0 0
    %148 = vmatpush1.bf16.msra.mxu0 %v139
    %149 = vmatprep.subr.bf16.mxu0 0
    %150 = vmatpush1.bf16.msra.mxu0 %v140
    %151 = vmatprep.subr.bf16.mxu0 0
    %152 = vmatpush1.bf16.msra.mxu0 0
    %153 = vmatprep.subr.bf16.mxu0 0
    %154 = vmatpush1.bf16.msra.mxu0 0
    %155 = vmatprep.subr.bf16.mxu0 0
    %156 = vmatpush1.bf16.msra.mxu0 0
    %157 = vmatprep.subr.bf16.mxu0 0
    %158 = vmatpush1.bf16.msra.mxu0 0
    %159 = vmatprep.subr.bf16.mxu0 0
    %160 = vmatpush1.bf16.msra.mxu0 0
    %161 = vmatprep.subr.bf16.mxu0 0
    %162 = vmatpush1.bf16.msra.mxu0 0
    %163 = vmatprep.subr.bf16.mxu0 0
    %164 = vmatpush1.bf16.msra.mxu0 0
    %165 = vmatprep.subr.bf16.mxu0 0
    %166 = vmatpush1.bf16.msra.mxu0 0
    %167 = vmatprep.subr.bf16.mxu0 0
    %168 = vmatpush1.bf16.msra.mxu0 0
    %169 = vmatprep.subr.bf16.mxu0 0
    %170 = vmatpush1.bf16.msra.mxu0 0
    %171 = vmatprep.subr.bf16.mxu0 0
    %172 = vmatpush1.bf16.msra.mxu0 0
    %173 = vmatprep.subr.bf16.mxu0 0
    %174 = vmatpush1.bf16.msra.mxu0 0
    %175 = vmatprep.subr.bf16.mxu0 0
    %176 = vmatpush1.bf16.msra.mxu0 0
    %177 = vmatprep.subr.bf16.mxu0 0
    %178 = vmatpush1.bf16.msra.mxu0 0
    %179 = vmatprep.mubr.bf16.mxu0 0
    %180 = vmatmul.mubr.bf16.gmra.mrb[0].mxu0 %v145
    %v181 = vpop.f32.mrb[0].mxu0
    %v182 = vadd.f32 0.0, %v181
    %v183 = vpop.f32.mrb[0].mxu0
    %v184 = vpop.f32.mrb[0].mxu0
    %v185 = vadd.f32 0.0, %v184
    %v186 = vpop.f32.mrb[0].mxu0
    %187 = vdwg.mxu0
    %v188 = vld [vmem:[#allocation8] sm:$0xf]
    %v189 = vld [vmem:[#allocation8 + $0x4] sm:$0xf]
    %v190 = vld [vmem:[#allocation8 + $0x8] sm:$0xf]
    %v191 = vld [vmem:[#allocation8 + $0xc] sm:$0xf]
    %v192 = vpack.c.b16 %v119, %v118
    %v193 = vpack.c.b16 %v120, %v104
    %v194 = vpack.c.b16 %v106, %v121
    %v199 = vunpack.c.l.b16 %v188
    %v200 = vunpack.c.l.b16 %v189
    %v201 = vunpack.c.l.b16 %v190
    %v202 = vunpack.c.l.b16 %v191
    %v203 = vpack.c.b16 %v200, %v199
    %v204 = vpack.c.b16 %v202, %v201
    %v208 = vsel %vm143, %v192, 0
    %v211 = vsel %vm143, %v193, 0
    %v214 = vsel %vm143, %v194, 0
    %216 = vmatprep.subr.bf16.mxu0 0
    %217 = vmatpush1.bf16.msra.mxu0 %v203
    %218 = vmatprep.subr.bf16.mxu0 0
    %219 = vmatpush1.bf16.msra.mxu0 %v204
    %220 = vmatprep.subr.bf16.mxu0 0
    %221 = vmatpush1.bf16.msra.mxu0 0
    %222 = vmatprep.subr.bf16.mxu0 0
    %223 = vmatpush1.bf16.msra.mxu0 0
    %224 = vmatprep.subr.bf16.mxu0 0
    %225 = vmatpush1.bf16.msra.mxu0 0
    %226 = vmatprep.subr.bf16.mxu0 0
    %227 = vmatpush1.bf16.msra.mxu0 0
    %228 = vmatprep.subr.bf16.mxu0 0
    %229 = vmatpush1.bf16.msra.mxu0 0
    %230 = vmatprep.subr.bf16.mxu0 0
    %231 = vmatpush1.bf16.msra.mxu0 0
    %232 = vmatprep.subr.bf16.mxu0 0
    %233 = vmatpush1.bf16.msra.mxu0 0
    %234 = vmatprep.subr.bf16.mxu0 0
    %235 = vmatpush1.bf16.msra.mxu0 0
    %236 = vmatprep.subr.bf16.mxu0 0
    %237 = vmatpush1.bf16.msra.mxu0 0
    %238 = vmatprep.subr.bf16.mxu0 0
    %239 = vmatpush1.bf16.msra.mxu0 0
    %240 = vmatprep.subr.bf16.mxu0 0
    %241 = vmatpush1.bf16.msra.mxu0 0
    %242 = vmatprep.subr.bf16.mxu0 0
    %243 = vmatpush1.bf16.msra.mxu0 0
    %244 = vmatprep.subr.bf16.mxu0 0
    %245 = vmatpush1.bf16.msra.mxu0 0
    %246 = vmatprep.subr.bf16.mxu0 0
    %247 = vmatpush1.bf16.msra.mxu0 0
    %248 = vmatprep.mubr.bf16.mxu0 0
    %249 = vmatmul.mubr.bf16.gmra.mrb[0].mxu0 %v208
    %v250 = vpop.f32.mrb[0].mxu0
    %v251 = vadd.f32 0.0, %v250
    %v252 = vpop.f32.mrb[0].mxu0
    %v253 = vpop.f32.mrb[0].mxu0
    %v254 = vadd.f32 0.0, %v253
    %v255 = vpop.f32.mrb[0].mxu0
    %256 = vmatprep.mubr.bf16.mxu0 0
    %257 = vmatmul.mubr.bf16.gmra.mrb[0].mxu0 %v211
    %v258 = vpop.f32.mrb[0].mxu0
    %v259 = vadd.f32 0.0, %v258
    %v260 = vpop.f32.mrb[0].mxu0
    %v261 = vpop.f32.mrb[0].mxu0
    %v262 = vadd.f32 0.0, %v261
    %v263 = vpop.f32.mrb[0].mxu0
    %264 = vmatprep.mubr.bf16.mxu0 0
    %265 = vmatmul.mubr.bf16.gmra.mrb[0].mxu0 %v214
    %v266 = vpop.f32.mrb[0].mxu0
    %v267 = vadd.f32 0.0, %v266
    %v268 = vpop.f32.mrb[0].mxu0
    %v269 = vpop.f32.mrb[0].mxu0
    %v270 = vadd.f32 0.0, %v269
    %v271 = vpop.f32.mrb[0].mxu0
    %272 = vdwg.mxu0
    %275 = vrot.lane.b32.xlu0 %v182, 120
    %v276 = vpop.permute.xlu0 %275
    %277 = vrot.lane.b32.xlu0 %v185, 120
    %v278 = vpop.permute.xlu0 %277
    %279 = vrot.lane.b32.xlu0 %v182, 112
    %v280 = vpop.permute.xlu0 %279
    %281 = vrot.lane.b32.xlu0 %v185, 112
    %v282 = vpop.permute.xlu0 %281
    %283 = vrot.lane.b32.xlu0 %v182, 104
    %v284 = vpop.permute.xlu0 %283
    %285 = vrot.lane.b32.xlu0 %v185, 104
    %v286 = vpop.permute.xlu0 %285
    %293 = vrot.lane.b32.xlu0 %v251, 112
    %v294 = vpop.permute.xlu0 %293
    %295 = vrot.lane.b32.xlu0 %v254, 112
    %v296 = vpop.permute.xlu0 %295
    %297 = vrot.lane.b32.xlu0 %v259, 112
    %v298 = vpop.permute.xlu0 %297
    %299 = vrot.lane.b32.xlu0 %v262, 112
    %v300 = vpop.permute.xlu0 %299
    %301 = vrot.lane.b32.xlu0 %v267, 112
    %v302 = vpop.permute.xlu0 %301
    %303 = vrot.lane.b32.xlu0 %v270, 112
    %v304 = vpop.permute.xlu0 %303
    %305 = vrot.lane.b32.xlu0 %v251, 96
    %v306 = vpop.permute.xlu0 %305
    %307 = vrot.lane.b32.xlu0 %v254, 96
    %v308 = vpop.permute.xlu0 %307
    %309 = vrot.lane.b32.xlu0 %v259, 96
    %v310 = vpop.permute.xlu0 %309
    %311 = vrot.lane.b32.xlu0 %v262, 96
    %v312 = vpop.permute.xlu0 %311
    %313 = vrot.lane.b32.xlu0 %v267, 96
    %v314 = vpop.permute.xlu0 %313
    %315 = vrot.lane.b32.xlu0 %v270, 96
    %v316 = vpop.permute.xlu0 %315
    %317 = vrot.lane.b32.xlu0 %v251, 80
    %v318 = vpop.permute.xlu0 %317
    %319 = vrot.lane.b32.xlu0 %v254, 80
    %v320 = vpop.permute.xlu0 %319
    %321 = vrot.lane.b32.xlu0 %v259, 80
    %v322 = vpop.permute.xlu0 %321
    %323 = vrot.lane.b32.xlu0 %v262, 80
    %v324 = vpop.permute.xlu0 %323
    %325 = vrot.lane.b32.xlu0 %v267, 80
    %v326 = vpop.permute.xlu0 %325
    %327 = vrot.lane.b32.xlu0 %v270, 80
    %v328 = vpop.permute.xlu0 %327
    %vm329 = vcmask 64512
    %v330 = vsel %vm329, %v182, 0
    %v332 = vsel %vm329, %v251, 0
    %v334 = vsel %vm329, %v254, 0
    %v336 = vsel %vm329, %v259, 0
    %338 = vmatprep.subr.mxu0 0.0
    %339 = vmatpush1.xpose.msra.mxu0 %v332
    %340 = vmatprep.subr.mxu0 0.0
    %341 = vmatpush1.xpose.msra.mxu0 %v334
    %342 = vmatprep.subr.mxu0 0.0
    %343 = vmatpush1.xpose.msra.mxu0 %v336
    %344 = vmatprep.subr.mxu0 0.0
    %345 = vmatpush1.xpose.msra.mxu0 0.0
    %346 = vmatprep.subr.mxu0 0.0
    %347 = vmatpush1.xpose.msra.mxu0 0.0
    %348 = vmatprep.subr.mxu0 0.0
    %349 = vmatpush1.xpose.msra.mxu0 0.0
    %350 = vmatprep.subr.mxu0 0.0
    %351 = vmatpush1.xpose.msra.mxu0 0.0
    %352 = vmatprep.subr.mxu0 0.0
    %353 = vmatpush1.xpose.msra.mxu0 0.0
    %354 = vmatprep.subr.mxu0 0.0
    %355 = vmatpush1.xpose.msra.mxu0 0.0
    %356 = vmatprep.subr.mxu0 0.0
    %357 = vmatpush1.xpose.msra.mxu0 0.0
    %358 = vmatprep.subr.mxu0 0.0
    %359 = vmatpush1.xpose.msra.mxu0 0.0
    %360 = vmatprep.subr.mxu0 0.0
    %361 = vmatpush1.xpose.msra.mxu0 0.0
    %362 = vmatprep.subr.mxu0 0.0
    %363 = vmatpush1.xpose.msra.mxu0 0.0
    %364 = vmatprep.subr.mxu0 0.0
    %365 = vmatpush1.xpose.msra.mxu0 0.0
    %366 = vmatprep.subr.mxu0 0.0
    %367 = vmatpush1.xpose.msra.mxu0 0.0
    %368 = vmatprep.subr.mxu0 0.0
    %369 = vmatpush1.xpose.msra.mxu0 0.0
    %370 = vmatprep.subr.mxu0 0.0
    %371 = vmatpush1.xpose.msra.mxu0 0.0
    %372 = vmatprep.subr.mxu0 0.0
    %373 = vmatpush1.xpose.msra.mxu0 0.0
    %374 = vmatprep.subr.mxu0 0.0
    %375 = vmatpush1.xpose.msra.mxu0 0.0
    %376 = vmatprep.subr.mxu0 0.0
    %377 = vmatpush1.xpose.msra.mxu0 0.0
    %378 = vmatprep.subr.mxu0 0.0
    %379 = vmatpush1.xpose.msra.mxu0 0.0
    %380 = vmatprep.subr.mxu0 0.0
    %381 = vmatpush1.xpose.msra.mxu0 0.0
    %382 = vmatprep.subr.mxu0 0.0
    %383 = vmatpush1.xpose.msra.mxu0 0.0
    %384 = vmatprep.subr.mxu0 0.0
    %385 = vmatpush1.xpose.msra.mxu0 0.0
    %386 = vmatprep.subr.mxu0 0.0
    %387 = vmatpush1.xpose.msra.mxu0 0.0
    %388 = vmatprep.subr.mxu0 0.0
    %389 = vmatpush1.xpose.msra.mxu0 0.0
    %390 = vmatprep.subr.mxu0 0.0
    %391 = vmatpush1.xpose.msra.mxu0 0.0
    %392 = vmatprep.subr.mxu0 0.0
    %393 = vmatpush1.xpose.msra.mxu0 0.0
    %394 = vmatprep.subr.mxu0 0.0
    %395 = vmatpush1.xpose.msra.mxu0 0.0
    %396 = vmatprep.subr.mxu0 0.0
    %397 = vmatpush1.xpose.msra.mxu0 0.0
    %398 = vmatprep.subr.mxu0 0.0
    %399 = vmatpush1.xpose.msra.mxu0 0.0
    %400 = vmatprep.subr.mxu0 0.0
    %401 = vmatpush1.xpose.msra.mxu0 0.0
    %402 = vmatprep.mubr.f32.mxu0 0.0
    %403 = vmatmul.mubr.f32.gmra.mrb[0].mxu0 %v330
    %v404 = vpop.f32.mrb[0].mxu0
    %v405 = vadd.f32 0.0, %v404
    %v406 = vpop.f32.mrb[0].mxu0
    %407 = vdwg.mxu0
    %v408 = vsel %vm329, %v185, 0
    %v410 = vsel %vm329, %v262, 0
    %v412 = vsel %vm329, %v267, 0
    %v414 = vsel %vm329, %v270, 0
    %416 = vmatprep.subr.mxu0 0.0
    %417 = vmatpush1.xpose.msra.mxu0 %v410
    %418 = vmatprep.subr.mxu0 0.0
    %419 = vmatpush1.xpose.msra.mxu0 %v412
    %420 = vmatprep.subr.mxu0 0.0
    %421 = vmatpush1.xpose.msra.mxu0 %v414
    %422 = vmatprep.subr.mxu0 0.0
    %423 = vmatpush1.xpose.msra.mxu0 0.0
    %424 = vmatprep.subr.mxu0 0.0
    %425 = vmatpush1.xpose.msra.mxu0 0.0
    %426 = vmatprep.subr.mxu0 0.0
    %427 = vmatpush1.xpose.msra.mxu0 0.0
    %428 = vmatprep.subr.mxu0 0.0
    %429 = vmatpush1.xpose.msra.mxu0 0.0
    %430 = vmatprep.subr.mxu0 0.0
    %431 = vmatpush1.xpose.msra.mxu0 0.0
    %432 = vmatprep.subr.mxu0 0.0
    %433 = vmatpush1.xpose.msra.mxu0 0.0
    %434 = vmatprep.subr.mxu0 0.0
    %435 = vmatpush1.xpose.msra.mxu0 0.0
    %436 = vmatprep.subr.mxu0 0.0
    %437 = vmatpush1.xpose.msra.mxu0 0.0
    %438 = vmatprep.subr.mxu0 0.0
    %439 = vmatpush1.xpose.msra.mxu0 0.0
    %440 = vmatprep.subr.mxu0 0.0
    %441 = vmatpush1.xpose.msra.mxu0 0.0
    %442 = vmatprep.subr.mxu0 0.0
    %443 = vmatpush1.xpose.msra.mxu0 0.0
    %444 = vmatprep.subr.mxu0 0.0
    %445 = vmatpush1.xpose.msra.mxu0 0.0
    %446 = vmatprep.subr.mxu0 0.0
    %447 = vmatpush1.xpose.msra.mxu0 0.0
    %448 = vmatprep.subr.mxu0 0.0
    %449 = vmatpush1.xpose.msra.mxu0 0.0
    %450 = vmatprep.subr.mxu0 0.0
    %451 = vmatpush1.xpose.msra.mxu0 0.0
    %452 = vmatprep.subr.mxu0 0.0
    %453 = vmatpush1.xpose.msra.mxu0 0.0
    %454 = vmatprep.subr.mxu0 0.0
    %455 = vmatpush1.xpose.msra.mxu0 0.0
    %456 = vmatprep.subr.mxu0 0.0
    %457 = vmatpush1.xpose.msra.mxu0 0.0
    %458 = vmatprep.subr.mxu0 0.0
    %459 = vmatpush1.xpose.msra.mxu0 0.0
    %460 = vmatprep.subr.mxu0 0.0
    %461 = vmatpush1.xpose.msra.mxu0 0.0
    %462 = vmatprep.subr.mxu0 0.0
    %463 = vmatpush1.xpose.msra.mxu0 0.0
    %464 = vmatprep.subr.mxu0 0.0
    %465 = vmatpush1.xpose.msra.mxu0 0.0
    %466 = vmatprep.subr.mxu0 0.0
    %467 = vmatpush1.xpose.msra.mxu0 0.0
    %468 = vmatprep.subr.mxu0 0.0
    %469 = vmatpush1.xpose.msra.mxu0 0.0
    %470 = vmatprep.subr.mxu0 0.0
    %471 = vmatpush1.xpose.msra.mxu0 0.0
    %472 = vmatprep.subr.mxu0 0.0
    %473 = vmatpush1.xpose.msra.mxu0 0.0
    %474 = vmatprep.subr.mxu0 0.0
    %475 = vmatpush1.xpose.msra.mxu0 0.0
    %476 = vmatprep.subr.mxu0 0.0
    %477 = vmatpush1.xpose.msra.mxu0 0.0
    %478 = vmatprep.subr.mxu0 0.0
    %479 = vmatpush1.xpose.msra.mxu0 0.0
    %480 = vmatprep.mubr.f32.mxu0 0.0
    %481 = vmatmul.mubr.f32.gmra.mrb[0].mxu0 %v408
    %v482 = vpop.f32.mrb[0].mxu0
    %v483 = vadd.f32 0.0, %v482
    %v484 = vpop.f32.mrb[0].mxu0
    %485 = vdwg.mxu0
    %v486 = vsel %vm329, %v276, 0
    %v488 = vsel %vm329, %v294, 0
    %v490 = vsel %vm329, %v296, 0
    %v492 = vsel %vm329, %v298, 0
    %494 = vmatprep.subr.mxu0 0.0
    %495 = vmatpush1.xpose.msra.mxu0 %v488
    %496 = vmatprep.subr.mxu0 0.0
    %497 = vmatpush1.xpose.msra.mxu0 %v490
    %498 = vmatprep.subr.mxu0 0.0
    %499 = vmatpush1.xpose.msra.mxu0 %v492
    %500 = vmatprep.subr.mxu0 0.0
    %501 = vmatpush1.xpose.msra.mxu0 0.0
    %502 = vmatprep.subr.mxu0 0.0
    %503 = vmatpush1.xpose.msra.mxu0 0.0
    %504 = vmatprep.subr.mxu0 0.0
    %505 = vmatpush1.xpose.msra.mxu0 0.0
    %506 = vmatprep.subr.mxu0 0.0
    %507 = vmatpush1.xpose.msra.mxu0 0.0
    %508 = vmatprep.subr.mxu0 0.0
    %509 = vmatpush1.xpose.msra.mxu0 0.0
    %510 = vmatprep.subr.mxu0 0.0
    %511 = vmatpush1.xpose.msra.mxu0 0.0
    %512 = vmatprep.subr.mxu0 0.0
    %513 = vmatpush1.xpose.msra.mxu0 0.0
    %514 = vmatprep.subr.mxu0 0.0
    %515 = vmatpush1.xpose.msra.mxu0 0.0
    %516 = vmatprep.subr.mxu0 0.0
    %517 = vmatpush1.xpose.msra.mxu0 0.0
    %518 = vmatprep.subr.mxu0 0.0
    %519 = vmatpush1.xpose.msra.mxu0 0.0
    %520 = vmatprep.subr.mxu0 0.0
    %521 = vmatpush1.xpose.msra.mxu0 0.0
    %522 = vmatprep.subr.mxu0 0.0
    %523 = vmatpush1.xpose.msra.mxu0 0.0
    %524 = vmatprep.subr.mxu0 0.0
    %525 = vmatpush1.xpose.msra.mxu0 0.0
    %526 = vmatprep.subr.mxu0 0.0
    %527 = vmatpush1.xpose.msra.mxu0 0.0
    %528 = vmatprep.subr.mxu0 0.0
    %529 = vmatpush1.xpose.msra.mxu0 0.0
    %530 = vmatprep.subr.mxu0 0.0
    %531 = vmatpush1.xpose.msra.mxu0 0.0
    %532 = vmatprep.subr.mxu0 0.0
    %533 = vmatpush1.xpose.msra.mxu0 0.0
    %534 = vmatprep.subr.mxu0 0.0
    %535 = vmatpush1.xpose.msra.mxu0 0.0
    %536 = vmatprep.subr.mxu0 0.0
    %537 = vmatpush1.xpose.msra.mxu0 0.0
    %538 = vmatprep.subr.mxu0 0.0
    %539 = vmatpush1.xpose.msra.mxu0 0.0
    %540 = vmatprep.subr.mxu0 0.0
    %541 = vmatpush1.xpose.msra.mxu0 0.0
    %542 = vmatprep.subr.mxu0 0.0
    %543 = vmatpush1.xpose.msra.mxu0 0.0
    %544 = vmatprep.subr.mxu0 0.0
    %545 = vmatpush1.xpose.msra.mxu0 0.0
    %546 = vmatprep.subr.mxu0 0.0
    %547 = vmatpush1.xpose.msra.mxu0 0.0
    %548 = vmatprep.subr.mxu0 0.0
    %549 = vmatpush1.xpose.msra.mxu0 0.0
    %550 = vmatprep.subr.mxu0 0.0
    %551 = vmatpush1.xpose.msra.mxu0 0.0
    %552 = vmatprep.subr.mxu0 0.0
    %553 = vmatpush1.xpose.msra.mxu0 0.0
    %554 = vmatprep.subr.mxu0 0.0
    %555 = vmatpush1.xpose.msra.mxu0 0.0
    %556 = vmatprep.subr.mxu0 0.0
    %557 = vmatpush1.xpose.msra.mxu0 0.0
    %558 = vmatprep.mubr.f32.mxu0 0.0
    %559 = vmatmul.mubr.f32.gmra.mrb[0].mxu0 %v486
    %v560 = vpop.f32.mrb[0].mxu0
    %v561 = vadd.f32 0.0, %v560
    %v562 = vpop.f32.mrb[0].mxu0
    %563 = vdwg.mxu0
    %v564 = vsel %vm329, %v278, 0
    %v566 = vsel %vm329, %v300, 0
    %v568 = vsel %vm329, %v302, 0
    %v570 = vsel %vm329, %v304, 0
    %572 = vmatprep.subr.mxu0 0.0
    %573 = vmatpush1.xpose.msra.mxu0 %v566
    %574 = vmatprep.subr.mxu0 0.0
    %575 = vmatpush1.xpose.msra.mxu0 %v568
    %576 = vmatprep.subr.mxu0 0.0
    %577 = vmatpush1.xpose.msra.mxu0 %v570
    %578 = vmatprep.subr.mxu0 0.0
    %579 = vmatpush1.xpose.msra.mxu0 0.0
    %580 = vmatprep.subr.mxu0 0.0
    %581 = vmatpush1.xpose.msra.mxu0 0.0
    %582 = vmatprep.subr.mxu0 0.0
    %583 = vmatpush1.xpose.msra.mxu0 0.0
    %584 = vmatprep.subr.mxu0 0.0
    %585 = vmatpush1.xpose.msra.mxu0 0.0
    %586 = vmatprep.subr.mxu0 0.0
    %587 = vmatpush1.xpose.msra.mxu0 0.0
    %588 = vmatprep.subr.mxu0 0.0
    %589 = vmatpush1.xpose.msra.mxu0 0.0
    %590 = vmatprep.subr.mxu0 0.0
    %591 = vmatpush1.xpose.msra.mxu0 0.0
    %592 = vmatprep.subr.mxu0 0.0
    %593 = vmatpush1.xpose.msra.mxu0 0.0
    %594 = vmatprep.subr.mxu0 0.0
    %595 = vmatpush1.xpose.msra.mxu0 0.0
    %596 = vmatprep.subr.mxu0 0.0
    %597 = vmatpush1.xpose.msra.mxu0 0.0
    %598 = vmatprep.subr.mxu0 0.0
    %599 = vmatpush1.xpose.msra.mxu0 0.0
    %600 = vmatprep.subr.mxu0 0.0
    %601 = vmatpush1.xpose.msra.mxu0 0.0
    %602 = vmatprep.subr.mxu0 0.0
    %603 = vmatpush1.xpose.msra.mxu0 0.0
    %604 = vmatprep.subr.mxu0 0.0
    %605 = vmatpush1.xpose.msra.mxu0 0.0
    %606 = vmatprep.subr.mxu0 0.0
    %607 = vmatpush1.xpose.msra.mxu0 0.0
    %608 = vmatprep.subr.mxu0 0.0
    %609 = vmatpush1.xpose.msra.mxu0 0.0
    %610 = vmatprep.subr.mxu0 0.0
    %611 = vmatpush1.xpose.msra.mxu0 0.0
    %612 = vmatprep.subr.mxu0 0.0
    %613 = vmatpush1.xpose.msra.mxu0 0.0
    %614 = vmatprep.subr.mxu0 0.0
    %615 = vmatpush1.xpose.msra.mxu0 0.0
    %616 = vmatprep.subr.mxu0 0.0
    %617 = vmatpush1.xpose.msra.mxu0 0.0
    %618 = vmatprep.subr.mxu0 0.0
    %619 = vmatpush1.xpose.msra.mxu0 0.0
    %620 = vmatprep.subr.mxu0 0.0
    %621 = vmatpush1.xpose.msra.mxu0 0.0
    %622 = vmatprep.subr.mxu0 0.0
    %623 = vmatpush1.xpose.msra.mxu0 0.0
    %624 = vmatprep.subr.mxu0 0.0
    %625 = vmatpush1.xpose.msra.mxu0 0.0
    %626 = vmatprep.subr.mxu0 0.0
    %627 = vmatpush1.xpose.msra.mxu0 0.0
    %628 = vmatprep.subr.mxu0 0.0
    %629 = vmatpush1.xpose.msra.mxu0 0.0
    %630 = vmatprep.subr.mxu0 0.0
    %631 = vmatpush1.xpose.msra.mxu0 0.0
    %632 = vmatprep.subr.mxu0 0.0
    %633 = vmatpush1.xpose.msra.mxu0 0.0
    %634 = vmatprep.subr.mxu0 0.0
    %635 = vmatpush1.xpose.msra.mxu0 0.0
    %636 = vmatprep.mubr.f32.mxu0 0.0
    %637 = vmatmul.mubr.f32.gmra.mrb[0].mxu0 %v564
    %v638 = vpop.f32.mrb[0].mxu0
    %v639 = vadd.f32 0.0, %v638
    %v640 = vpop.f32.mrb[0].mxu0
    %641 = vdwg.mxu0
    %v642 = vsel %vm329, %v280, 0
    %v644 = vsel %vm329, %v306, 0
    %v646 = vsel %vm329, %v308, 0
    %v648 = vsel %vm329, %v310, 0
    %650 = vmatprep.subr.mxu0 0.0
    %651 = vmatpush1.xpose.msra.mxu0 %v644
    %652 = vmatprep.subr.mxu0 0.0
    %653 = vmatpush1.xpose.msra.mxu0 %v646
    %654 = vmatprep.subr.mxu0 0.0
    %655 = vmatpush1.xpose.msra.mxu0 %v648
    %656 = vmatprep.subr.mxu0 0.0
    %657 = vmatpush1.xpose.msra.mxu0 0.0
    %658 = vmatprep.subr.mxu0 0.0
    %659 = vmatpush1.xpose.msra.mxu0 0.0
    %660 = vmatprep.subr.mxu0 0.0
    %661 = vmatpush1.xpose.msra.mxu0 0.0
    %662 = vmatprep.subr.mxu0 0.0
    %663 = vmatpush1.xpose.msra.mxu0 0.0
    %664 = vmatprep.subr.mxu0 0.0
    %665 = vmatpush1.xpose.msra.mxu0 0.0
    %666 = vmatprep.subr.mxu0 0.0
    %667 = vmatpush1.xpose.msra.mxu0 0.0
    %668 = vmatprep.subr.mxu0 0.0
    %669 = vmatpush1.xpose.msra.mxu0 0.0
    %670 = vmatprep.subr.mxu0 0.0
    %671 = vmatpush1.xpose.msra.mxu0 0.0
    %672 = vmatprep.subr.mxu0 0.0
    %673 = vmatpush1.xpose.msra.mxu0 0.0
    %674 = vmatprep.subr.mxu0 0.0
    %675 = vmatpush1.xpose.msra.mxu0 0.0
    %676 = vmatprep.subr.mxu0 0.0
    %677 = vmatpush1.xpose.msra.mxu0 0.0
    %678 = vmatprep.subr.mxu0 0.0
    %679 = vmatpush1.xpose.msra.mxu0 0.0
    %680 = vmatprep.subr.mxu0 0.0
    %681 = vmatpush1.xpose.msra.mxu0 0.0
    %682 = vmatprep.subr.mxu0 0.0
    %683 = vmatpush1.xpose.msra.mxu0 0.0
    %684 = vmatprep.subr.mxu0 0.0
    %685 = vmatpush1.xpose.msra.mxu0 0.0
    %686 = vmatprep.subr.mxu0 0.0
    %687 = vmatpush1.xpose.msra.mxu0 0.0
    %688 = vmatprep.subr.mxu0 0.0
    %689 = vmatpush1.xpose.msra.mxu0 0.0
    %690 = vmatprep.subr.mxu0 0.0
    %691 = vmatpush1.xpose.msra.mxu0 0.0
    %692 = vmatprep.subr.mxu0 0.0
    %693 = vmatpush1.xpose.msra.mxu0 0.0
    %694 = vmatprep.subr.mxu0 0.0
    %695 = vmatpush1.xpose.msra.mxu0 0.0
    %696 = vmatprep.subr.mxu0 0.0
    %697 = vmatpush1.xpose.msra.mxu0 0.0
    %698 = vmatprep.subr.mxu0 0.0
    %699 = vmatpush1.xpose.msra.mxu0 0.0
    %700 = vmatprep.subr.mxu0 0.0
    %701 = vmatpush1.xpose.msra.mxu0 0.0
    %702 = vmatprep.subr.mxu0 0.0
    %703 = vmatpush1.xpose.msra.mxu0 0.0
    %704 = vmatprep.subr.mxu0 0.0
    %705 = vmatpush1.xpose.msra.mxu0 0.0
    %706 = vmatprep.subr.mxu0 0.0
    %707 = vmatpush1.xpose.msra.mxu0 0.0
    %708 = vmatprep.subr.mxu0 0.0
    %709 = vmatpush1.xpose.msra.mxu0 0.0
    %710 = vmatprep.subr.mxu0 0.0
    %711 = vmatpush1.xpose.msra.mxu0 0.0
    %712 = vmatprep.subr.mxu0 0.0
    %713 = vmatpush1.xpose.msra.mxu0 0.0
    %714 = vmatprep.mubr.f32.mxu0 0.0
    %715 = vmatmul.mubr.f32.gmra.mrb[0].mxu0 %v642
    %v716 = vpop.f32.mrb[0].mxu0
    %v717 = vadd.f32 0.0, %v716
    %v718 = vpop.f32.mrb[0].mxu0
    %719 = vdwg.mxu0
    %v720 = vsel %vm329, %v282, 0
    %v722 = vsel %vm329, %v312, 0
    %v724 = vsel %vm329, %v314, 0
    %v726 = vsel %vm329, %v316, 0
    %728 = vmatprep.subr.mxu0 0.0
    %729 = vmatpush1.xpose.msra.mxu0 %v722
    %730 = vmatprep.subr.mxu0 0.0
    %731 = vmatpush1.xpose.msra.mxu0 %v724
    %732 = vmatprep.subr.mxu0 0.0
    %733 = vmatpush1.xpose.msra.mxu0 %v726
    %734 = vmatprep.subr.mxu0 0.0
    %735 = vmatpush1.xpose.msra.mxu0 0.0
    %736 = vmatprep.subr.mxu0 0.0
    %737 = vmatpush1.xpose.msra.mxu0 0.0
    %738 = vmatprep.subr.mxu0 0.0
    %739 = vmatpush1.xpose.msra.mxu0 0.0
    %740 = vmatprep.subr.mxu0 0.0
    %741 = vmatpush1.xpose.msra.mxu0 0.0
    %742 = vmatprep.subr.mxu0 0.0
    %743 = vmatpush1.xpose.msra.mxu0 0.0
    %744 = vmatprep.subr.mxu0 0.0
    %745 = vmatpush1.xpose.msra.mxu0 0.0
    %746 = vmatprep.subr.mxu0 0.0
    %747 = vmatpush1.xpose.msra.mxu0 0.0
    %748 = vmatprep.subr.mxu0 0.0
    %749 = vmatpush1.xpose.msra.mxu0 0.0
    %750 = vmatprep.subr.mxu0 0.0
    %751 = vmatpush1.xpose.msra.mxu0 0.0
    %752 = vmatprep.subr.mxu0 0.0
    %753 = vmatpush1.xpose.msra.mxu0 0.0
    %754 = vmatprep.subr.mxu0 0.0
    %755 = vmatpush1.xpose.msra.mxu0 0.0
    %756 = vmatprep.subr.mxu0 0.0
    %757 = vmatpush1.xpose.msra.mxu0 0.0
    %758 = vmatprep.subr.mxu0 0.0
    %759 = vmatpush1.xpose.msra.mxu0 0.0
    %760 = vmatprep.subr.mxu0 0.0
    %761 = vmatpush1.xpose.msra.mxu0 0.0
    %762 = vmatprep.subr.mxu0 0.0
    %763 = vmatpush1.xpose.msra.mxu0 0.0
    %764 = vmatprep.subr.mxu0 0.0
    %765 = vmatpush1.xpose.msra.mxu0 0.0
    %766 = vmatprep.subr.mxu0 0.0
    %767 = vmatpush1.xpose.msra.mxu0 0.0
    %768 = vmatprep.subr.mxu0 0.0
    %769 = vmatpush1.xpose.msra.mxu0 0.0
    %770 = vmatprep.subr.mxu0 0.0
    %771 = vmatpush1.xpose.msra.mxu0 0.0
    %772 = vmatprep.subr.mxu0 0.0
    %773 = vmatpush1.xpose.msra.mxu0 0.0
    %774 = vmatprep.subr.mxu0 0.0
    %775 = vmatpush1.xpose.msra.mxu0 0.0
    %776 = vmatprep.subr.mxu0 0.0
    %777 = vmatpush1.xpose.msra.mxu0 0.0
    %778 = vmatprep.subr.mxu0 0.0
    %779 = vmatpush1.xpose.msra.mxu0 0.0
    %780 = vmatprep.subr.mxu0 0.0
    %781 = vmatpush1.xpose.msra.mxu0 0.0
    %782 = vmatprep.subr.mxu0 0.0
    %783 = vmatpush1.xpose.msra.mxu0 0.0
    %784 = vmatprep.subr.mxu0 0.0
    %785 = vmatpush1.xpose.msra.mxu0 0.0
    %786 = vmatprep.subr.mxu0 0.0
    %787 = vmatpush1.xpose.msra.mxu0 0.0
    %788 = vmatprep.subr.mxu0 0.0
    %789 = vmatpush1.xpose.msra.mxu0 0.0
    %790 = vmatprep.subr.mxu0 0.0
    %791 = vmatpush1.xpose.msra.mxu0 0.0
    %792 = vmatprep.mubr.f32.mxu0 0.0
    %793 = vmatmul.mubr.f32.gmra.mrb[0].mxu0 %v720
    %v794 = vpop.f32.mrb[0].mxu0
    %v795 = vadd.f32 0.0, %v794
    %v796 = vpop.f32.mrb[0].mxu0
    %797 = vdwg.mxu0
    %v798 = vsel %vm329, %v284, 0
    %v800 = vsel %vm329, %v318, 0
    %v802 = vsel %vm329, %v320, 0
    %v804 = vsel %vm329, %v322, 0
    %806 = vmatprep.subr.mxu0 0.0
    %807 = vmatpush1.xpose.msra.mxu0 %v800
    %808 = vmatprep.subr.mxu0 0.0
    %809 = vmatpush1.xpose.msra.mxu0 %v802
    %810 = vmatprep.subr.mxu0 0.0
    %811 = vmatpush1.xpose.msra.mxu0 %v804
    %812 = vmatprep.subr.mxu0 0.0
    %813 = vmatpush1.xpose.msra.mxu0 0.0
    %814 = vmatprep.subr.mxu0 0.0
    %815 = vmatpush1.xpose.msra.mxu0 0.0
    %816 = vmatprep.subr.mxu0 0.0
    %817 = vmatpush1.xpose.msra.mxu0 0.0
    %818 = vmatprep.subr.mxu0 0.0
    %819 = vmatpush1.xpose.msra.mxu0 0.0
    %820 = vmatprep.subr.mxu0 0.0
    %821 = vmatpush1.xpose.msra.mxu0 0.0
    %822 = vmatprep.subr.mxu0 0.0
    %823 = vmatpush1.xpose.msra.mxu0 0.0
    %824 = vmatprep.subr.mxu0 0.0
    %825 = vmatpush1.xpose.msra.mxu0 0.0
    %826 = vmatprep.subr.mxu0 0.0
    %827 = vmatpush1.xpose.msra.mxu0 0.0
    %828 = vmatprep.subr.mxu0 0.0
    %829 = vmatpush1.xpose.msra.mxu0 0.0
    %830 = vmatprep.subr.mxu0 0.0
    %831 = vmatpush1.xpose.msra.mxu0 0.0
    %832 = vmatprep.subr.mxu0 0.0
    %833 = vmatpush1.xpose.msra.mxu0 0.0
    %834 = vmatprep.subr.mxu0 0.0
    %835 = vmatpush1.xpose.msra.mxu0 0.0
    %836 = vmatprep.subr.mxu0 0.0
    %837 = vmatpush1.xpose.msra.mxu0 0.0
    %838 = vmatprep.subr.mxu0 0.0
    %839 = vmatpush1.xpose.msra.mxu0 0.0
    %840 = vmatprep.subr.mxu0 0.0
    %841 = vmatpush1.xpose.msra.mxu0 0.0
    %842 = vmatprep.subr.mxu0 0.0
    %843 = vmatpush1.xpose.msra.mxu0 0.0
    %844 = vmatprep.subr.mxu0 0.0
    %845 = vmatpush1.xpose.msra.mxu0 0.0
    %846 = vmatprep.subr.mxu0 0.0
    %847 = vmatpush1.xpose.msra.mxu0 0.0
    %848 = vmatprep.subr.mxu0 0.0
    %849 = vmatpush1.xpose.msra.mxu0 0.0
    %850 = vmatprep.subr.mxu0 0.0
    %851 = vmatpush1.xpose.msra.mxu0 0.0
    %852 = vmatprep.subr.mxu0 0.0
    %853 = vmatpush1.xpose.msra.mxu0 0.0
    %854 = vmatprep.subr.mxu0 0.0
    %855 = vmatpush1.xpose.msra.mxu0 0.0
    %856 = vmatprep.subr.mxu0 0.0
    %857 = vmatpush1.xpose.msra.mxu0 0.0
    %858 = vmatprep.subr.mxu0 0.0
    %859 = vmatpush1.xpose.msra.mxu0 0.0
    %860 = vmatprep.subr.mxu0 0.0
    %861 = vmatpush1.xpose.msra.mxu0 0.0
    %862 = vmatprep.subr.mxu0 0.0
    %863 = vmatpush1.xpose.msra.mxu0 0.0
    %864 = vmatprep.subr.mxu0 0.0
    %865 = vmatpush1.xpose.msra.mxu0 0.0
    %866 = vmatprep.subr.mxu0 0.0
    %867 = vmatpush1.xpose.msra.mxu0 0.0
    %868 = vmatprep.subr.mxu0 0.0
    %869 = vmatpush1.xpose.msra.mxu0 0.0
    %870 = vmatprep.mubr.f32.mxu0 0.0
    %871 = vmatmul.mubr.f32.gmra.mrb[0].mxu0 %v798
    %v872 = vpop.f32.mrb[0].mxu0
    %v873 = vadd.f32 0.0, %v872
    %v874 = vpop.f32.mrb[0].mxu0
    %875 = vdwg.mxu0
    %v876 = vsel %vm329, %v286, 0
    %v878 = vsel %vm329, %v324, 0
    %v880 = vsel %vm329, %v326, 0
    %v882 = vsel %vm329, %v328, 0
    %884 = vmatprep.subr.mxu0 0.0
    %885 = vmatpush1.xpose.msra.mxu0 %v878
    %886 = vmatprep.subr.mxu0 0.0
    %887 = vmatpush1.xpose.msra.mxu0 %v880
    %888 = vmatprep.subr.mxu0 0.0
    %889 = vmatpush1.xpose.msra.mxu0 %v882
    %890 = vmatprep.subr.mxu0 0.0
    %891 = vmatpush1.xpose.msra.mxu0 0.0
    %892 = vmatprep.subr.mxu0 0.0
    %893 = vmatpush1.xpose.msra.mxu0 0.0
    %894 = vmatprep.subr.mxu0 0.0
    %895 = vmatpush1.xpose.msra.mxu0 0.0
    %896 = vmatprep.subr.mxu0 0.0
    %897 = vmatpush1.xpose.msra.mxu0 0.0
    %898 = vmatprep.subr.mxu0 0.0
    %899 = vmatpush1.xpose.msra.mxu0 0.0
    %900 = vmatprep.subr.mxu0 0.0
    %901 = vmatpush1.xpose.msra.mxu0 0.0
    %902 = vmatprep.subr.mxu0 0.0
    %903 = vmatpush1.xpose.msra.mxu0 0.0
    %904 = vmatprep.subr.mxu0 0.0
    %905 = vmatpush1.xpose.msra.mxu0 0.0
    %906 = vmatprep.subr.mxu0 0.0
    %907 = vmatpush1.xpose.msra.mxu0 0.0
    %908 = vmatprep.subr.mxu0 0.0
    %909 = vmatpush1.xpose.msra.mxu0 0.0
    %910 = vmatprep.subr.mxu0 0.0
    %911 = vmatpush1.xpose.msra.mxu0 0.0
    %912 = vmatprep.subr.mxu0 0.0
    %913 = vmatpush1.xpose.msra.mxu0 0.0
    %914 = vmatprep.subr.mxu0 0.0
    %915 = vmatpush1.xpose.msra.mxu0 0.0
    %916 = vmatprep.subr.mxu0 0.0
    %917 = vmatpush1.xpose.msra.mxu0 0.0
    %918 = vmatprep.subr.mxu0 0.0
    %919 = vmatpush1.xpose.msra.mxu0 0.0
    %920 = vmatprep.subr.mxu0 0.0
    %921 = vmatpush1.xpose.msra.mxu0 0.0
    %922 = vmatprep.subr.mxu0 0.0
    %923 = vmatpush1.xpose.msra.mxu0 0.0
    %924 = vmatprep.subr.mxu0 0.0
    %925 = vmatpush1.xpose.msra.mxu0 0.0
    %926 = vmatprep.subr.mxu0 0.0
    %927 = vmatpush1.xpose.msra.mxu0 0.0
    %928 = vmatprep.subr.mxu0 0.0
    %929 = vmatpush1.xpose.msra.mxu0 0.0
    %930 = vmatprep.subr.mxu0 0.0
    %931 = vmatpush1.xpose.msra.mxu0 0.0
    %932 = vmatprep.subr.mxu0 0.0
    %933 = vmatpush1.xpose.msra.mxu0 0.0
    %934 = vmatprep.subr.mxu0 0.0
    %935 = vmatpush1.xpose.msra.mxu0 0.0
    %936 = vmatprep.subr.mxu0 0.0
    %937 = vmatpush1.xpose.msra.mxu0 0.0
    %938 = vmatprep.subr.mxu0 0.0
    %939 = vmatpush1.xpose.msra.mxu0 0.0
    %940 = vmatprep.subr.mxu0 0.0
    %941 = vmatpush1.xpose.msra.mxu0 0.0
    %942 = vmatprep.subr.mxu0 0.0
    %943 = vmatpush1.xpose.msra.mxu0 0.0
    %944 = vmatprep.subr.mxu0 0.0
    %945 = vmatpush1.xpose.msra.mxu0 0.0
    %946 = vmatprep.subr.mxu0 0.0
    %947 = vmatpush1.xpose.msra.mxu0 0.0
    %948 = vmatprep.mubr.f32.mxu0 0.0
    %949 = vmatmul.mubr.f32.gmra.mrb[0].mxu0 %v876
    %v950 = vpop.f32.mrb[0].mxu0
    %v951 = vadd.f32 0.0, %v950
    %v952 = vpop.f32.mrb[0].mxu0
    %953 = vdwg.mxu0
    %vm954 = vcmask 195584
    %v955 = vsel %vm954, %v405, -inf
    %956 = vmax.xlane.f32.xlu0 %v955
    %v957 = vpop.xlane.xlu0 %956
    %v958 = vsel %vm954, %v483, -inf
    %959 = vmax.xlane.f32.xlu0 %v958
    %v960 = vpop.xlane.xlu0 %959
    %v961 = vsel %vm954, %v561, -inf
    %962 = vmax.xlane.f32.xlu0 %v961
    %v963 = vpop.xlane.xlu0 %962
    %v964 = vsel %vm954, %v639, -inf
    %965 = vmax.xlane.f32.xlu0 %v964
    %v966 = vpop.xlane.xlu0 %965
    %v967 = vsel %vm954, %v717, -inf
    %968 = vmax.xlane.f32.xlu0 %v967
    %v969 = vpop.xlane.xlu0 %968
    %v970 = vsel %vm954, %v795, -inf
    %971 = vmax.xlane.f32.xlu0 %v970
    %v972 = vpop.xlane.xlu0 %971
    %v973 = vsel %vm954, %v873, -inf
    %974 = vmax.xlane.f32.xlu0 %v973
    %v975 = vpop.xlane.xlu0 %974
    %v976 = vsel %vm954, %v951, -inf
    %977 = vmax.xlane.f32.xlu0 %v976
    %v978 = vpop.xlane.xlu0 %977
    %v979 = vsub.f32 %v405, %v957
    %v980 = vsub.f32 %v483, %v960
    %v981 = vsub.f32 %v561, %v963
    %v982 = vsub.f32 %v639, %v966
    %v983 = vsub.f32 %v717, %v969
    %v984 = vsub.f32 %v795, %v972
    %v985 = vsub.f32 %v873, %v975
    %v986 = vsub.f32 %v951, %v978
    %v987 = vmul.f32 %v979, 1.442695
    %v988 = vpow.pop %v987
    %v989 = vmul.f32 %v980, 1.442695
    %v990 = vpow.pop %v989
    %v991 = vmul.f32 %v981, 1.442695
    %v992 = vpow.pop %v991
    %v993 = vmul.f32 %v982, 1.442695
    %v994 = vpow.pop %v993
    %v995 = vmul.f32 %v983, 1.442695
    %v996 = vpow.pop %v995
    %v997 = vmul.f32 %v984, 1.442695
    %v998 = vpow.pop %v997
    %v999 = vmul.f32 %v985, 1.442695
    %v1000 = vpow.pop %v999
    %v1001 = vmul.f32 %v986, 1.442695
    %v1002 = vpow.pop %v1001
    %v1003 = vsel %vm954, %v988, 0.0
    %1004 = vadd.xlane.f32.xlu0 %v1003
    %v1005 = vpop.xlane.xlu0 %1004
    %v1006 = vsel %vm954, %v990, 0.0
    %1007 = vadd.xlane.f32.xlu0 %v1006
    %v1008 = vpop.xlane.xlu0 %1007
    %v1009 = vsel %vm954, %v992, 0.0
    %1010 = vadd.xlane.f32.xlu0 %v1009
    %v1011 = vpop.xlane.xlu0 %1010
    %v1012 = vsel %vm954, %v994, 0.0
    %1013 = vadd.xlane.f32.xlu0 %v1012
    %v1014 = vpop.xlane.xlu0 %1013
    %v1015 = vsel %vm954, %v996, 0.0
    %1016 = vadd.xlane.f32.xlu0 %v1015
    %v1017 = vpop.xlane.xlu0 %1016
    %v1018 = vsel %vm954, %v998, 0.0
    %1019 = vadd.xlane.f32.xlu0 %v1018
    %v1020 = vpop.xlane.xlu0 %1019
    %v1021 = vsel %vm954, %v1000, 0.0
    %1022 = vadd.xlane.f32.xlu0 %v1021
    %v1023 = vpop.xlane.xlu0 %1022
    %v1024 = vsel %vm954, %v1002, 0.0
    %1025 = vadd.xlane.f32.xlu0 %v1024
    %v1026 = vpop.xlane.xlu0 %1025
    %1027 = vrot.lane.b32.xlu0 %v251, 120
    %v1028 = vpop.permute.xlu0 %1027
    %1029 = vrot.lane.b32.xlu0 %v254, 120
    %v1030 = vpop.permute.xlu0 %1029
    %1031 = vrot.lane.b32.xlu0 %v259, 120
    %v1032 = vpop.permute.xlu0 %1031
    %v1037 = vsel %vm954, %v988, 0
    %1039 = vmatprep.subr.mxu0 0.0
    %1040 = vmatpush1.msra.mxu0 %v1028
    %1041 = vmatprep.subr.mxu0 0.0
    %1042 = vmatpush1.msra.mxu0 %v1030
    %1043 = vmatprep.subr.mxu0 0.0
    %1044 = vmatpush1.msra.mxu0 %v1032
    %1045 = vmatprep.subr.mxu0 0.0
    %1046 = vmatpush1.msra.mxu0 0.0
    %1047 = vmatprep.subr.mxu0 0.0
    %1048 = vmatpush1.msra.mxu0 0.0
    %1049 = vmatprep.subr.mxu0 0.0
    %1050 = vmatpush1.msra.mxu0 0.0
    %1051 = vmatprep.subr.mxu0 0.0
    %1052 = vmatpush1.msra.mxu0 0.0
    %1053 = vmatprep.subr.mxu0 0.0
    %1054 = vmatpush1.msra.mxu0 0.0
    %1055 = vmatprep.subr.mxu0 0.0
    %1056 = vmatpush1.msra.mxu0 0.0
    %1057 = vmatprep.subr.mxu0 0.0
    %1058 = vmatpush1.msra.mxu0 0.0
    %1059 = vmatprep.subr.mxu0 0.0
    %1060 = vmatpush1.msra.mxu0 0.0
    %1061 = vmatprep.subr.mxu0 0.0
    %1062 = vmatpush1.msra.mxu0 0.0
    %1063 = vmatprep.subr.mxu0 0.0
    %1064 = vmatpush1.msra.mxu0 0.0
    %1065 = vmatprep.subr.mxu0 0.0
    %1066 = vmatpush1.msra.mxu0 0.0
    %1067 = vmatprep.subr.mxu0 0.0
    %1068 = vmatpush1.msra.mxu0 0.0
    %1069 = vmatprep.subr.mxu0 0.0
    %1070 = vmatpush1.msra.mxu0 0.0
    %1071 = vmatprep.subr.mxu0 0.0
    %1072 = vmatpush1.msra.mxu0 0.0
    %1073 = vmatprep.subr.mxu0 0.0
    %1074 = vmatpush1.msra.mxu0 0.0
    %1075 = vmatprep.subr.mxu0 0.0
    %1076 = vmatpush1.msra.mxu0 0.0
    %1077 = vmatprep.subr.mxu0 0.0
    %1078 = vmatpush1.msra.mxu0 0.0
    %1079 = vmatprep.subr.mxu0 0.0
    %1080 = vmatpush1.msra.mxu0 0.0
    %1081 = vmatprep.subr.mxu0 0.0
    %1082 = vmatpush1.msra.mxu0 0.0
    %1083 = vmatprep.subr.mxu0 0.0
    %1084 = vmatpush1.msra.mxu0 0.0
    %1085 = vmatprep.subr.mxu0 0.0
    %1086 = vmatpush1.msra.mxu0 0.0
    %1087 = vmatprep.subr.mxu0 0.0
    %1088 = vmatpush1.msra.mxu0 0.0
    %1089 = vmatprep.subr.mxu0 0.0
    %1090 = vmatpush1.msra.mxu0 0.0
    %1091 = vmatprep.subr.mxu0 0.0
    %1092 = vmatpush1.msra.mxu0 0.0
    %1093 = vmatprep.subr.mxu0 0.0
    %1094 = vmatpush1.msra.mxu0 0.0
    %1095 = vmatprep.subr.mxu0 0.0
    %1096 = vmatpush1.msra.mxu0 0.0
    %1097 = vmatprep.subr.mxu0 0.0
    %1098 = vmatpush1.msra.mxu0 0.0
    %1099 = vmatprep.subr.mxu0 0.0
    %1100 = vmatpush1.msra.mxu0 0.0
    %1101 = vmatprep.subr.mxu0 0.0
    %1102 = vmatpush1.msra.mxu0 0.0
    %1103 = vmatprep.mubr.f32.mxu0 0.0
    %1104 = vmatmul.mubr.f32.gmra.mrb[0].mxu0 %v1037
    %v1105 = vpop.f32.mrb[0].mxu0
    %v1106 = vadd.f32 0.0, %v1105
    %v1107 = vpop.f32.mrb[0].mxu0
    %1108 = vdwg.mxu0
    %1109 = vrot.lane.b32.xlu0 %v262, 120
    %v1110 = vpop.permute.xlu0 %1109
    %1111 = vrot.lane.b32.xlu0 %v267, 120
    %v1112 = vpop.permute.xlu0 %1111
    %1113 = vrot.lane.b32.xlu0 %v270, 120
    %v1114 = vpop.permute.xlu0 %1113
    %v1119 = vsel %vm954, %v990, 0
    %1121 = vmatprep.subr.mxu0 0.0
    %1122 = vmatpush1.msra.mxu0 %v1110
    %1123 = vmatprep.subr.mxu0 0.0
    %1124 = vmatpush1.msra.mxu0 %v1112
    %1125 = vmatprep.subr.mxu0 0.0
    %1126 = vmatpush1.msra.mxu0 %v1114
    %1127 = vmatprep.subr.mxu0 0.0
    %1128 = vmatpush1.msra.mxu0 0.0
    %1129 = vmatprep.subr.mxu0 0.0
    %1130 = vmatpush1.msra.mxu0 0.0
    %1131 = vmatprep.subr.mxu0 0.0
    %1132 = vmatpush1.msra.mxu0 0.0
    %1133 = vmatprep.subr.mxu0 0.0
    %1134 = vmatpush1.msra.mxu0 0.0
    %1135 = vmatprep.subr.mxu0 0.0
    %1136 = vmatpush1.msra.mxu0 0.0
    %1137 = vmatprep.subr.mxu0 0.0
    %1138 = vmatpush1.msra.mxu0 0.0
    %1139 = vmatprep.subr.mxu0 0.0
    %1140 = vmatpush1.msra.mxu0 0.0
    %1141 = vmatprep.subr.mxu0 0.0
    %1142 = vmatpush1.msra.mxu0 0.0
    %1143 = vmatprep.subr.mxu0 0.0
    %1144 = vmatpush1.msra.mxu0 0.0
    %1145 = vmatprep.subr.mxu0 0.0
    %1146 = vmatpush1.msra.mxu0 0.0
    %1147 = vmatprep.subr.mxu0 0.0
    %1148 = vmatpush1.msra.mxu0 0.0
    %1149 = vmatprep.subr.mxu0 0.0
    %1150 = vmatpush1.msra.mxu0 0.0
    %1151 = vmatprep.subr.mxu0 0.0
    %1152 = vmatpush1.msra.mxu0 0.0
    %1153 = vmatprep.subr.mxu0 0.0
    %1154 = vmatpush1.msra.mxu0 0.0
    %1155 = vmatprep.subr.mxu0 0.0
    %1156 = vmatpush1.msra.mxu0 0.0
    %1157 = vmatprep.subr.mxu0 0.0
    %1158 = vmatpush1.msra.mxu0 0.0
    %1159 = vmatprep.subr.mxu0 0.0
    %1160 = vmatpush1.msra.mxu0 0.0
    %1161 = vmatprep.subr.mxu0 0.0
    %1162 = vmatpush1.msra.mxu0 0.0
    %1163 = vmatprep.subr.mxu0 0.0
    %1164 = vmatpush1.msra.mxu0 0.0
    %1165 = vmatprep.subr.mxu0 0.0
    %1166 = vmatpush1.msra.mxu0 0.0
    %1167 = vmatprep.subr.mxu0 0.0
    %1168 = vmatpush1.msra.mxu0 0.0
    %1169 = vmatprep.subr.mxu0 0.0
    %1170 = vmatpush1.msra.mxu0 0.0
    %1171 = vmatprep.subr.mxu0 0.0
    %1172 = vmatpush1.msra.mxu0 0.0
    %1173 = vmatprep.subr.mxu0 0.0
    %1174 = vmatpush1.msra.mxu0 0.0
    %1175 = vmatprep.subr.mxu0 0.0
    %1176 = vmatpush1.msra.mxu0 0.0
    %1177 = vmatprep.subr.mxu0 0.0
    %1178 = vmatpush1.msra.mxu0 0.0
    %1179 = vmatprep.subr.mxu0 0.0
    %1180 = vmatpush1.msra.mxu0 0.0
    %1181 = vmatprep.subr.mxu0 0.0
    %1182 = vmatpush1.msra.mxu0 0.0
    %1183 = vmatprep.subr.mxu0 0.0
    %1184 = vmatpush1.msra.mxu0 0.0
    %1185 = vmatprep.mubr.f32.mxu0 0.0
    %1186 = vmatmul.mubr.f32.gmra.mrb[0].mxu0 %v1119
    %v1187 = vpop.f32.mrb[0].mxu0
    %v1188 = vadd.f32 0.0, %v1187
    %v1189 = vpop.f32.mrb[0].mxu0
    %1190 = vdwg.mxu0
    %1191 = vrot.lane.b32.xlu0 %v294, 120
    %v1192 = vpop.permute.xlu0 %1191
    %1193 = vrot.lane.b32.xlu0 %v296, 120
    %v1194 = vpop.permute.xlu0 %1193
    %1195 = vrot.lane.b32.xlu0 %v298, 120
    %v1196 = vpop.permute.xlu0 %1195
    %v1201 = vsel %vm954, %v992, 0
    %1203 = vmatprep.subr.mxu0 0.0
    %1204 = vmatpush1.msra.mxu0 %v1192
    %1205 = vmatprep.subr.mxu0 0.0
    %1206 = vmatpush1.msra.mxu0 %v1194
    %1207 = vmatprep.subr.mxu0 0.0
    %1208 = vmatpush1.msra.mxu0 %v1196
    %1209 = vmatprep.subr.mxu0 0.0
    %1210 = vmatpush1.msra.mxu0 0.0
    %1211 = vmatprep.subr.mxu0 0.0
    %1212 = vmatpush1.msra.mxu0 0.0
    %1213 = vmatprep.subr.mxu0 0.0
    %1214 = vmatpush1.msra.mxu0 0.0
    %1215 = vmatprep.subr.mxu0 0.0
    %1216 = vmatpush1.msra.mxu0 0.0
    %1217 = vmatprep.subr.mxu0 0.0
    %1218 = vmatpush1.msra.mxu0 0.0
    %1219 = vmatprep.subr.mxu0 0.0
    %1220 = vmatpush1.msra.mxu0 0.0
    %1221 = vmatprep.subr.mxu0 0.0
    %1222 = vmatpush1.msra.mxu0 0.0
    %1223 = vmatprep.subr.mxu0 0.0
    %1224 = vmatpush1.msra.mxu0 0.0
    %1225 = vmatprep.subr.mxu0 0.0
    %1226 = vmatpush1.msra.mxu0 0.0
    %1227 = vmatprep.subr.mxu0 0.0
    %1228 = vmatpush1.msra.mxu0 0.0
    %1229 = vmatprep.subr.mxu0 0.0
    %1230 = vmatpush1.msra.mxu0 0.0
    %1231 = vmatprep.subr.mxu0 0.0
    %1232 = vmatpush1.msra.mxu0 0.0
    %1233 = vmatprep.subr.mxu0 0.0
    %1234 = vmatpush1.msra.mxu0 0.0
    %1235 = vmatprep.subr.mxu0 0.0
    %1236 = vmatpush1.msra.mxu0 0.0
    %1237 = vmatprep.subr.mxu0 0.0
    %1238 = vmatpush1.msra.mxu0 0.0
    %1239 = vmatprep.subr.mxu0 0.0
    %1240 = vmatpush1.msra.mxu0 0.0
    %1241 = vmatprep.subr.mxu0 0.0
    %1242 = vmatpush1.msra.mxu0 0.0
    %1243 = vmatprep.subr.mxu0 0.0
    %1244 = vmatpush1.msra.mxu0 0.0
    %1245 = vmatprep.subr.mxu0 0.0
    %1246 = vmatpush1.msra.mxu0 0.0
    %1247 = vmatprep.subr.mxu0 0.0
    %1248 = vmatpush1.msra.mxu0 0.0
    %1249 = vmatprep.subr.mxu0 0.0
    %1250 = vmatpush1.msra.mxu0 0.0
    %1251 = vmatprep.subr.mxu0 0.0
    %1252 = vmatpush1.msra.mxu0 0.0
    %1253 = vmatprep.subr.mxu0 0.0
    %1254 = vmatpush1.msra.mxu0 0.0
    %1255 = vmatprep.subr.mxu0 0.0
    %1256 = vmatpush1.msra.mxu0 0.0
    %1257 = vmatprep.subr.mxu0 0.0
    %1258 = vmatpush1.msra.mxu0 0.0
    %1259 = vmatprep.subr.mxu0 0.0
    %1260 = vmatpush1.msra.mxu0 0.0
    %1261 = vmatprep.subr.mxu0 0.0
    %1262 = vmatpush1.msra.mxu0 0.0
    %1263 = vmatprep.subr.mxu0 0.0
    %1264 = vmatpush1.msra.mxu0 0.0
    %1265 = vmatprep.subr.mxu0 0.0
    %1266 = vmatpush1.msra.mxu0 0.0
    %1267 = vmatprep.mubr.f32.mxu0 0.0
    %1268 = vmatmul.mubr.f32.gmra.mrb[0].mxu0 %v1201
    %v1269 = vpop.f32.mrb[0].mxu0
    %v1270 = vadd.f32 0.0, %v1269
    %v1271 = vpop.f32.mrb[0].mxu0
    %1272 = vdwg.mxu0
    %1273 = vrot.lane.b32.xlu0 %v300, 120
    %v1274 = vpop.permute.xlu0 %1273
    %1275 = vrot.lane.b32.xlu0 %v302, 120
    %v1276 = vpop.permute.xlu0 %1275
    %1277 = vrot.lane.b32.xlu0 %v304, 120
    %v1278 = vpop.permute.xlu0 %1277
    %v1283 = vsel %vm954, %v994, 0
    %1285 = vmatprep.subr.mxu0 0.0
    %1286 = vmatpush1.msra.mxu0 %v1274
    %1287 = vmatprep.subr.mxu0 0.0
    %1288 = vmatpush1.msra.mxu0 %v1276
    %1289 = vmatprep.subr.mxu0 0.0
    %1290 = vmatpush1.msra.mxu0 %v1278
    %1291 = vmatprep.subr.mxu0 0.0
    %1292 = vmatpush1.msra.mxu0 0.0
    %1293 = vmatprep.subr.mxu0 0.0
    %1294 = vmatpush1.msra.mxu0 0.0
    %1295 = vmatprep.subr.mxu0 0.0
    %1296 = vmatpush1.msra.mxu0 0.0
    %1297 = vmatprep.subr.mxu0 0.0
    %1298 = vmatpush1.msra.mxu0 0.0
    %1299 = vmatprep.subr.mxu0 0.0
    %1300 = vmatpush1.msra.mxu0 0.0
    %1301 = vmatprep.subr.mxu0 0.0
    %1302 = vmatpush1.msra.mxu0 0.0
    %1303 = vmatprep.subr.mxu0 0.0
    %1304 = vmatpush1.msra.mxu0 0.0
    %1305 = vmatprep.subr.mxu0 0.0
    %1306 = vmatpush1.msra.mxu0 0.0
    %1307 = vmatprep.subr.mxu0 0.0
    %1308 = vmatpush1.msra.mxu0 0.0
    %1309 = vmatprep.subr.mxu0 0.0
    %1310 = vmatpush1.msra.mxu0 0.0
    %1311 = vmatprep.subr.mxu0 0.0
    %1312 = vmatpush1.msra.mxu0 0.0
    %1313 = vmatprep.subr.mxu0 0.0
    %1314 = vmatpush1.msra.mxu0 0.0
    %1315 = vmatprep.subr.mxu0 0.0
    %1316 = vmatpush1.msra.mxu0 0.0
    %1317 = vmatprep.subr.mxu0 0.0
    %1318 = vmatpush1.msra.mxu0 0.0
    %1319 = vmatprep.subr.mxu0 0.0
    %1320 = vmatpush1.msra.mxu0 0.0
    %1321 = vmatprep.subr.mxu0 0.0
    %1322 = vmatpush1.msra.mxu0 0.0
    %1323 = vmatprep.subr.mxu0 0.0
    %1324 = vmatpush1.msra.mxu0 0.0
    %1325 = vmatprep.subr.mxu0 0.0
    %1326 = vmatpush1.msra.mxu0 0.0
    %1327 = vmatprep.subr.mxu0 0.0
    %1328 = vmatpush1.msra.mxu0 0.0
    %1329 = vmatprep.subr.mxu0 0.0
    %1330 = vmatpush1.msra.mxu0 0.0
    %1331 = vmatprep.subr.mxu0 0.0
    %1332 = vmatpush1.msra.mxu0 0.0
    %1333 = vmatprep.subr.mxu0 0.0
    %1334 = vmatpush1.msra.mxu0 0.0
    %1335 = vmatprep.subr.mxu0 0.0
    %1336 = vmatpush1.msra.mxu0 0.0
    %1337 = vmatprep.subr.mxu0 0.0
    %1338 = vmatpush1.msra.mxu0 0.0
    %1339 = vmatprep.subr.mxu0 0.0
    %1340 = vmatpush1.msra.mxu0 0.0
    %1341 = vmatprep.subr.mxu0 0.0
    %1342 = vmatpush1.msra.mxu0 0.0
    %1343 = vmatprep.subr.mxu0 0.0
    %1344 = vmatpush1.msra.mxu0 0.0
    %1345 = vmatprep.subr.mxu0 0.0
    %1346 = vmatpush1.msra.mxu0 0.0
    %1347 = vmatprep.subr.mxu0 0.0
    %1348 = vmatpush1.msra.mxu0 0.0
    %1349 = vmatprep.mubr.f32.mxu0 0.0
    %1350 = vmatmul.mubr.f32.gmra.mrb[0].mxu0 %v1283
    %v1351 = vpop.f32.mrb[0].mxu0
    %v1352 = vadd.f32 0.0, %v1351
    %v1353 = vpop.f32.mrb[0].mxu0
    %1354 = vdwg.mxu0
    %1355 = vrot.lane.b32.xlu0 %v306, 120
    %v1356 = vpop.permute.xlu0 %1355
    %1357 = vrot.lane.b32.xlu0 %v308, 120
    %v1358 = vpop.permute.xlu0 %1357
    %1359 = vrot.lane.b32.xlu0 %v310, 120
    %v1360 = vpop.permute.xlu0 %1359
    %v1365 = vsel %vm954, %v996, 0
    %1367 = vmatprep.subr.mxu0 0.0
    %1368 = vmatpush1.msra.mxu0 %v1356
    %1369 = vmatprep.subr.mxu0 0.0
    %1370 = vmatpush1.msra.mxu0 %v1358
    %1371 = vmatprep.subr.mxu0 0.0
    %1372 = vmatpush1.msra.mxu0 %v1360
    %1373 = vmatprep.subr.mxu0 0.0
    %1374 = vmatpush1.msra.mxu0 0.0
    %1375 = vmatprep.subr.mxu0 0.0
    %1376 = vmatpush1.msra.mxu0 0.0
    %1377 = vmatprep.subr.mxu0 0.0
    %1378 = vmatpush1.msra.mxu0 0.0
    %1379 = vmatprep.subr.mxu0 0.0
    %1380 = vmatpush1.msra.mxu0 0.0
    %1381 = vmatprep.subr.mxu0 0.0
    %1382 = vmatpush1.msra.mxu0 0.0
    %1383 = vmatprep.subr.mxu0 0.0
    %1384 = vmatpush1.msra.mxu0 0.0
    %1385 = vmatprep.subr.mxu0 0.0
    %1386 = vmatpush1.msra.mxu0 0.0
    %1387 = vmatprep.subr.mxu0 0.0
    %1388 = vmatpush1.msra.mxu0 0.0
    %1389 = vmatprep.subr.mxu0 0.0
    %1390 = vmatpush1.msra.mxu0 0.0
    %1391 = vmatprep.subr.mxu0 0.0
    %1392 = vmatpush1.msra.mxu0 0.0
    %1393 = vmatprep.subr.mxu0 0.0
    %1394 = vmatpush1.msra.mxu0 0.0
    %1395 = vmatprep.subr.mxu0 0.0
    %1396 = vmatpush1.msra.mxu0 0.0
    %1397 = vmatprep.subr.mxu0 0.0
    %1398 = vmatpush1.msra.mxu0 0.0
    %1399 = vmatprep.subr.mxu0 0.0
    %1400 = vmatpush1.msra.mxu0 0.0
    %1401 = vmatprep.subr.mxu0 0.0
    %1402 = vmatpush1.msra.mxu0 0.0
    %1403 = vmatprep.subr.mxu0 0.0
    %1404 = vmatpush1.msra.mxu0 0.0
    %1405 = vmatprep.subr.mxu0 0.0
    %1406 = vmatpush1.msra.mxu0 0.0
    %1407 = vmatprep.subr.mxu0 0.0
    %1408 = vmatpush1.msra.mxu0 0.0
    %1409 = vmatprep.subr.mxu0 0.0
    %1410 = vmatpush1.msra.mxu0 0.0
    %1411 = vmatprep.subr.mxu0 0.0
    %1412 = vmatpush1.msra.mxu0 0.0
    %1413 = vmatprep.subr.mxu0 0.0
    %1414 = vmatpush1.msra.mxu0 0.0
    %1415 = vmatprep.subr.mxu0 0.0
    %1416 = vmatpush1.msra.mxu0 0.0
    %1417 = vmatprep.subr.mxu0 0.0
    %1418 = vmatpush1.msra.mxu0 0.0
    %1419 = vmatprep.subr.mxu0 0.0
    %1420 = vmatpush1.msra.mxu0 0.0
    %1421 = vmatprep.subr.mxu0 0.0
    %1422 = vmatpush1.msra.mxu0 0.0
    %1423 = vmatprep.subr.mxu0 0.0
    %1424 = vmatpush1.msra.mxu0 0.0
    %1425 = vmatprep.subr.mxu0 0.0
    %1426 = vmatpush1.msra.mxu0 0.0
    %1427 = vmatprep.subr.mxu0 0.0
    %1428 = vmatpush1.msra.mxu0 0.0
    %1429 = vmatprep.subr.mxu0 0.0
    %1430 = vmatpush1.msra.mxu0 0.0
    %1431 = vmatprep.mubr.f32.mxu0 0.0
    %1432 = vmatmul.mubr.f32.gmra.mrb[0].mxu0 %v1365
    %v1433 = vpop.f32.mrb[0].mxu0
    %v1434 = vadd.f32 0.0, %v1433
    %v1435 = vpop.f32.mrb[0].mxu0
    %1436 = vdwg.mxu0
    %1437 = vrot.lane.b32.xlu0 %v312, 120
    %v1438 = vpop.permute.xlu0 %1437
    %1439 = vrot.lane.b32.xlu0 %v314, 120
    %v1440 = vpop.permute.xlu0 %1439
    %1441 = vrot.lane.b32.xlu0 %v316, 120
    %v1442 = vpop.permute.xlu0 %1441
    %v1447 = vsel %vm954, %v998, 0
    %1449 = vmatprep.subr.mxu0 0.0
    %1450 = vmatpush1.msra.mxu0 %v1438
    %1451 = vmatprep.subr.mxu0 0.0
    %1452 = vmatpush1.msra.mxu0 %v1440
    %1453 = vmatprep.subr.mxu0 0.0
    %1454 = vmatpush1.msra.mxu0 %v1442
    %1455 = vmatprep.subr.mxu0 0.0
    %1456 = vmatpush1.msra.mxu0 0.0
    %1457 = vmatprep.subr.mxu0 0.0
    %1458 = vmatpush1.msra.mxu0 0.0
    %1459 = vmatprep.subr.mxu0 0.0
    %1460 = vmatpush1.msra.mxu0 0.0
    %1461 = vmatprep.subr.mxu0 0.0
    %1462 = vmatpush1.msra.mxu0 0.0
    %1463 = vmatprep.subr.mxu0 0.0
    %1464 = vmatpush1.msra.mxu0 0.0
    %1465 = vmatprep.subr.mxu0 0.0
    %1466 = vmatpush1.msra.mxu0 0.0
    %1467 = vmatprep.subr.mxu0 0.0
    %1468 = vmatpush1.msra.mxu0 0.0
    %1469 = vmatprep.subr.mxu0 0.0
    %1470 = vmatpush1.msra.mxu0 0.0
    %1471 = vmatprep.subr.mxu0 0.0
    %1472 = vmatpush1.msra.mxu0 0.0
    %1473 = vmatprep.subr.mxu0 0.0
    %1474 = vmatpush1.msra.mxu0 0.0
    %1475 = vmatprep.subr.mxu0 0.0
    %1476 = vmatpush1.msra.mxu0 0.0
    %1477 = vmatprep.subr.mxu0 0.0
    %1478 = vmatpush1.msra.mxu0 0.0
    %1479 = vmatprep.subr.mxu0 0.0
    %1480 = vmatpush1.msra.mxu0 0.0
    %1481 = vmatprep.subr.mxu0 0.0
    %1482 = vmatpush1.msra.mxu0 0.0
    %1483 = vmatprep.subr.mxu0 0.0
    %1484 = vmatpush1.msra.mxu0 0.0
    %1485 = vmatprep.subr.mxu0 0.0
    %1486 = vmatpush1.msra.mxu0 0.0
    %1487 = vmatprep.subr.mxu0 0.0
    %1488 = vmatpush1.msra.mxu0 0.0
    %1489 = vmatprep.subr.mxu0 0.0
    %1490 = vmatpush1.msra.mxu0 0.0
    %1491 = vmatprep.subr.mxu0 0.0
    %1492 = vmatpush1.msra.mxu0 0.0
    %1493 = vmatprep.subr.mxu0 0.0
    %1494 = vmatpush1.msra.mxu0 0.0
    %1495 = vmatprep.subr.mxu0 0.0
    %1496 = vmatpush1.msra.mxu0 0.0
    %1497 = vmatprep.subr.mxu0 0.0
    %1498 = vmatpush1.msra.mxu0 0.0
    %1499 = vmatprep.subr.mxu0 0.0
    %1500 = vmatpush1.msra.mxu0 0.0
    %1501 = vmatprep.subr.mxu0 0.0
    %1502 = vmatpush1.msra.mxu0 0.0
    %1503 = vmatprep.subr.mxu0 0.0
    %1504 = vmatpush1.msra.mxu0 0.0
    %1505 = vmatprep.subr.mxu0 0.0
    %1506 = vmatpush1.msra.mxu0 0.0
    %1507 = vmatprep.subr.mxu0 0.0
    %1508 = vmatpush1.msra.mxu0 0.0
    %1509 = vmatprep.subr.mxu0 0.0
    %1510 = vmatpush1.msra.mxu0 0.0
    %1511 = vmatprep.subr.mxu0 0.0
    %1512 = vmatpush1.msra.mxu0 0.0
    %1513 = vmatprep.mubr.f32.mxu0 0.0
    %1514 = vmatmul.mubr.f32.gmra.mrb[0].mxu0 %v1447
    %v1515 = vpop.f32.mrb[0].mxu0
    %v1516 = vadd.f32 0.0, %v1515
    %v1517 = vpop.f32.mrb[0].mxu0
    %1518 = vdwg.mxu0
    %1519 = vrot.lane.b32.xlu0 %v318, 120
    %v1520 = vpop.permute.xlu0 %1519
    %1521 = vrot.lane.b32.xlu0 %v320, 120
    %v1522 = vpop.permute.xlu0 %1521
    %1523 = vrot.lane.b32.xlu0 %v322, 120
    %v1524 = vpop.permute.xlu0 %1523
    %v1529 = vsel %vm954, %v1000, 0
    %1531 = vmatprep.subr.mxu0 0.0
    %1532 = vmatpush1.msra.mxu0 %v1520
    %1533 = vmatprep.subr.mxu0 0.0
    %1534 = vmatpush1.msra.mxu0 %v1522
    %1535 = vmatprep.subr.mxu0 0.0
    %1536 = vmatpush1.msra.mxu0 %v1524
    %1537 = vmatprep.subr.mxu0 0.0
    %1538 = vmatpush1.msra.mxu0 0.0
    %1539 = vmatprep.subr.mxu0 0.0
    %1540 = vmatpush1.msra.mxu0 0.0
    %1541 = vmatprep.subr.mxu0 0.0
    %1542 = vmatpush1.msra.mxu0 0.0
    %1543 = vmatprep.subr.mxu0 0.0
    %1544 = vmatpush1.msra.mxu0 0.0
    %1545 = vmatprep.subr.mxu0 0.0
    %1546 = vmatpush1.msra.mxu0 0.0
    %1547 = vmatprep.subr.mxu0 0.0
    %1548 = vmatpush1.msra.mxu0 0.0
    %1549 = vmatprep.subr.mxu0 0.0
    %1550 = vmatpush1.msra.mxu0 0.0
    %1551 = vmatprep.subr.mxu0 0.0
    %1552 = vmatpush1.msra.mxu0 0.0
    %1553 = vmatprep.subr.mxu0 0.0
    %1554 = vmatpush1.msra.mxu0 0.0
    %1555 = vmatprep.subr.mxu0 0.0
    %1556 = vmatpush1.msra.mxu0 0.0
    %1557 = vmatprep.subr.mxu0 0.0
    %1558 = vmatpush1.msra.mxu0 0.0
    %1559 = vmatprep.subr.mxu0 0.0
    %1560 = vmatpush1.msra.mxu0 0.0
    %1561 = vmatprep.subr.mxu0 0.0
    %1562 = vmatpush1.msra.mxu0 0.0
    %1563 = vmatprep.subr.mxu0 0.0
    %1564 = vmatpush1.msra.mxu0 0.0
    %1565 = vmatprep.subr.mxu0 0.0
    %1566 = vmatpush1.msra.mxu0 0.0
    %1567 = vmatprep.subr.mxu0 0.0
    %1568 = vmatpush1.msra.mxu0 0.0
    %1569 = vmatprep.subr.mxu0 0.0
    %1570 = vmatpush1.msra.mxu0 0.0
    %1571 = vmatprep.subr.mxu0 0.0
    %1572 = vmatpush1.msra.mxu0 0.0
    %1573 = vmatprep.subr.mxu0 0.0
    %1574 = vmatpush1.msra.mxu0 0.0
    %1575 = vmatprep.subr.mxu0 0.0
    %1576 = vmatpush1.msra.mxu0 0.0
    %1577 = vmatprep.subr.mxu0 0.0
    %1578 = vmatpush1.msra.mxu0 0.0
    %1579 = vmatprep.subr.mxu0 0.0
    %1580 = vmatpush1.msra.mxu0 0.0
    %1581 = vmatprep.subr.mxu0 0.0
    %1582 = vmatpush1.msra.mxu0 0.0
    %1583 = vmatprep.subr.mxu0 0.0
    %1584 = vmatpush1.msra.mxu0 0.0
    %1585 = vmatprep.subr.mxu0 0.0
    %1586 = vmatpush1.msra.mxu0 0.0
    %1587 = vmatprep.subr.mxu0 0.0
    %1588 = vmatpush1.msra.mxu0 0.0
    %1589 = vmatprep.subr.mxu0 0.0
    %1590 = vmatpush1.msra.mxu0 0.0
    %1591 = vmatprep.subr.mxu0 0.0
    %1592 = vmatpush1.msra.mxu0 0.0
    %1593 = vmatprep.subr.mxu0 0.0
    %1594 = vmatpush1.msra.mxu0 0.0
    %1595 = vmatprep.mubr.f32.mxu0 0.0
    %1596 = vmatmul.mubr.f32.gmra.mrb[0].mxu0 %v1529
    %v1597 = vpop.f32.mrb[0].mxu0
    %v1598 = vadd.f32 0.0, %v1597
    %v1599 = vpop.f32.mrb[0].mxu0
    %1600 = vdwg.mxu0
    %1601 = vrot.lane.b32.xlu0 %v324, 120
    %v1602 = vpop.permute.xlu0 %1601
    %1603 = vrot.lane.b32.xlu0 %v326, 120
    %v1604 = vpop.permute.xlu0 %1603
    %1605 = vrot.lane.b32.xlu0 %v328, 120
    %v1606 = vpop.permute.xlu0 %1605
    %v1611 = vsel %vm954, %v1002, 0
    %1613 = vmatprep.subr.mxu0 0.0
    %1614 = vmatpush1.msra.mxu0 %v1602
    %1615 = vmatprep.subr.mxu0 0.0
    %1616 = vmatpush1.msra.mxu0 %v1604
    %1617 = vmatprep.subr.mxu0 0.0
    %1618 = vmatpush1.msra.mxu0 %v1606
    %1619 = vmatprep.subr.mxu0 0.0
    %1620 = vmatpush1.msra.mxu0 0.0
    %1621 = vmatprep.subr.mxu0 0.0
    %1622 = vmatpush1.msra.mxu0 0.0
    %1623 = vmatprep.subr.mxu0 0.0
    %1624 = vmatpush1.msra.mxu0 0.0
    %1625 = vmatprep.subr.mxu0 0.0
    %1626 = vmatpush1.msra.mxu0 0.0
    %1627 = vmatprep.subr.mxu0 0.0
    %1628 = vmatpush1.msra.mxu0 0.0
    %1629 = vmatprep.subr.mxu0 0.0
    %1630 = vmatpush1.msra.mxu0 0.0
    %1631 = vmatprep.subr.mxu0 0.0
    %1632 = vmatpush1.msra.mxu0 0.0
    %1633 = vmatprep.subr.mxu0 0.0
    %1634 = vmatpush1.msra.mxu0 0.0
    %1635 = vmatprep.subr.mxu0 0.0
    %1636 = vmatpush1.msra.mxu0 0.0
    %1637 = vmatprep.subr.mxu0 0.0
    %1638 = vmatpush1.msra.mxu0 0.0
    %1639 = vmatprep.subr.mxu0 0.0
    %1640 = vmatpush1.msra.mxu0 0.0
    %1641 = vmatprep.subr.mxu0 0.0
    %1642 = vmatpush1.msra.mxu0 0.0
    %1643 = vmatprep.subr.mxu0 0.0
    %1644 = vmatpush1.msra.mxu0 0.0
    %1645 = vmatprep.subr.mxu0 0.0
    %1646 = vmatpush1.msra.mxu0 0.0
    %1647 = vmatprep.subr.mxu0 0.0
    %1648 = vmatpush1.msra.mxu0 0.0
    %1649 = vmatprep.subr.mxu0 0.0
    %1650 = vmatpush1.msra.mxu0 0.0
    %1651 = vmatprep.subr.mxu0 0.0
    %1652 = vmatpush1.msra.mxu0 0.0
    %1653 = vmatprep.subr.mxu0 0.0
    %1654 = vmatpush1.msra.mxu0 0.0
    %1655 = vmatprep.subr.mxu0 0.0
    %1656 = vmatpush1.msra.mxu0 0.0
    %1657 = vmatprep.subr.mxu0 0.0
    %1658 = vmatpush1.msra.mxu0 0.0
    %1659 = vmatprep.subr.mxu0 0.0
    %1660 = vmatpush1.msra.mxu0 0.0
    %1661 = vmatprep.subr.mxu0 0.0
    %1662 = vmatpush1.msra.mxu0 0.0
    %1663 = vmatprep.subr.mxu0 0.0
    %1664 = vmatpush1.msra.mxu0 0.0
    %1665 = vmatprep.subr.mxu0 0.0
    %1666 = vmatpush1.msra.mxu0 0.0
    %1667 = vmatprep.subr.mxu0 0.0
    %1668 = vmatpush1.msra.mxu0 0.0
    %1669 = vmatprep.subr.mxu0 0.0
    %1670 = vmatpush1.msra.mxu0 0.0
    %1671 = vmatprep.subr.mxu0 0.0
    %1672 = vmatpush1.msra.mxu0 0.0
    %1673 = vmatprep.subr.mxu0 0.0
    %1674 = vmatpush1.msra.mxu0 0.0
    %1675 = vmatprep.subr.mxu0 0.0
    %1676 = vmatpush1.msra.mxu0 0.0
    %1677 = vmatprep.mubr.f32.mxu0 0.0
    %1678 = vmatmul.mubr.f32.gmra.mrb[0].mxu0 %v1611
    %v1679 = vpop.f32.mrb[0].mxu0
    %v1680 = vadd.f32 0.0, %v1679
    %v1681 = vpop.f32.mrb[0].mxu0
    %1682 = vdwg.mxu0
    %v1683 = vrcp.pop %v1005
    %v1684 = vrcp.pop %v1008
    %v1685 = vrcp.pop %v1011
    %v1686 = vrcp.pop %v1014
    %v1687 = vrcp.pop %v1017
    %v1688 = vrcp.pop %v1020
    %v1689 = vrcp.pop %v1023
    %v1690 = vrcp.pop %v1026
    %v1691 = vmul.f32 %v1106, %v1683
    %v1692 = vmul.f32 %v1188, %v1684
    %v1693 = vmul.f32 %v1270, %v1685
    %v1694 = vmul.f32 %v1352, %v1686
    %v1695 = vmul.f32 %v1434, %v1687
    %v1696 = vmul.f32 %v1516, %v1688
    %v1697 = vmul.f32 %v1598, %v1689
    %v1698 = vmul.f32 %v1680, %v1690
    %1701 = vrot.lane.b32.xlu0 %v1693, 8
    %v1702 = vpop.permute.xlu0 %1701
    %1703 = vrot.lane.b32.xlu0 %v1694, 8
    %v1704 = vpop.permute.xlu0 %1703
    %1709 = vrot.lane.b32.xlu0 %v1695, 16
    %v1710 = vpop.permute.xlu0 %1709
    %1711 = vrot.lane.b32.xlu0 %v1696, 16
    %v1712 = vpop.permute.xlu0 %1711
    %1717 = vrot.lane.b32.xlu0 %v1697, 24
    %v1718 = vpop.permute.xlu0 %1717
    %1719 = vrot.lane.b32.xlu0 %v1698, 24
    %v1720 = vpop.permute.xlu0 %1719
    %v1723 = vsel %vm329, %v1691, %v1702
    %v1724 = vsel %vm329, %v1692, %v1704
    %vm1725 = vcmask 130048
    %v1726 = vsel %vm1725, %v1723, %v1710
    %v1727 = vsel %vm1725, %v1724, %v1712
    %v1728 = vsel %vm954, %v1726, %v1718
    %v1729 = vsel %vm954, %v1727, %v1720
    %v1730 = vpack.c.bf16 %v1729, %v1728
    %v1731 = vld [vmem:[#allocation10] sm:$0xf]
    %v1732 = vld [vmem:[#allocation10 + $0x4] sm:$0xf]
    %v1733 = vld [vmem:[#allocation10 + $0x8] sm:$0xf]
    %v1734 = vld [vmem:[#allocation10 + $0xc] sm:$0xf]
    %v1735 = vld [vmem:[%s5] sm:$0x1]
    %v1737 = vlaneseq
    %v1738 = vshrl.u32 %v1737, 7
    %v1739 = vsub.s32 0, %v1738
    %v1740 = vrot.slane %v1735, %v1739
    %v1746 = vunpack.c.l.b16 %v1731
    %v1747 = vunpack.c.l.b16 %v1732
    %v1748 = vunpack.c.l.b16 %v1733
    %v1749 = vunpack.c.l.b16 %v1734
    %v1750 = vpack.c.b16 %v1747, %v1746
    %v1751 = vpack.c.b16 %v1749, %v1748
    %v1755 = vsel %vm143, %v1730, 0
    %1757 = vmatprep.subr.bf16.mxu0 0
    %1758 = vmatpush1.bf16.msra.mxu0 %v1750
    %1759 = vmatprep.subr.bf16.mxu0 0
    %1760 = vmatpush1.bf16.msra.mxu0 %v1751
    %1761 = vmatprep.subr.bf16.mxu0 0
    %1762 = vmatpush1.bf16.msra.mxu0 0
    %1763 = vmatprep.subr.bf16.mxu0 0
    %1764 = vmatpush1.bf16.msra.mxu0 0
    %1765 = vmatprep.subr.bf16.mxu0 0
    %1766 = vmatpush1.bf16.msra.mxu0 0
    %1767 = vmatprep.subr.bf16.mxu0 0
    %1768 = vmatpush1.bf16.msra.mxu0 0
    %1769 = vmatprep.subr.bf16.mxu0 0
    %1770 = vmatpush1.bf16.msra.mxu0 0
    %1771 = vmatprep.subr.bf16.mxu0 0
    %1772 = vmatpush1.bf16.msra.mxu0 0
    %1773 = vmatprep.subr.bf16.mxu0 0
    %1774 = vmatpush1.bf16.msra.mxu0 0
    %1775 = vmatprep.subr.bf16.mxu0 0
    %1776 = vmatpush1.bf16.msra.mxu0 0
    %1777 = vmatprep.subr.bf16.mxu0 0
    %1778 = vmatpush1.bf16.msra.mxu0 0
    %1779 = vmatprep.subr.bf16.mxu0 0
    %1780 = vmatpush1.bf16.msra.mxu0 0
    %1781 = vmatprep.subr.bf16.mxu0 0
    %1782 = vmatpush1.bf16.msra.mxu0 0
    %1783 = vmatprep.subr.bf16.mxu0 0
    %1784 = vmatpush1.bf16.msra.mxu0 0
    %1785 = vmatprep.subr.bf16.mxu0 0
    %1786 = vmatpush1.bf16.msra.mxu0 0
    %1787 = vmatprep.subr.bf16.mxu0 0
    %1788 = vmatpush1.bf16.msra.mxu0 0
    %1789 = vmatprep.mubr.bf16.mxu0 0
    %1790 = vmatmul.mubr.bf16.gmra.mrb[0].mxu0 %v1755
    %v1791 = vpop.f32.mrb[0].mxu0
    %v1792 = vadd.f32 %v1740, %v1791
    %v1793 = vpop.f32.mrb[0].mxu0
    %v1794 = vpop.f32.mrb[0].mxu0
    %v1795 = vadd.f32 %v1740, %v1794
    %v1796 = vpop.f32.mrb[0].mxu0
    %1797 = vdwg.mxu0
    %1798 = vst.msk [vmem:[#allocation11] sm:$0xff] %vm143, %v1792
    %1799 = vst.msk [vmem:[#allocation11 + $0x8] sm:$0xff] %vm143, %v1795
    // Predicated region
    $region46: #{tpu_custom_call.1} parent=1 // pred_check
      _
    $region47: #{tpu_custom_call.1} parent=1 // pred_check_branch
      %1801 = sbr.rel (0) target = $region49
    $region48: #{tpu_custom_call.1} parent=1 // pred_region
      %s1803 = ssub.s32 256, 256
      %1804 = vsyncadd [#allocation4], %s1803
      %s1805 = sshll.u32 [#allocation11], 4
      %s1806 = int_to_ptr.vmem [resolvable:$true] %s1805
      %1811 = dma.vmem_to_hbm [thread:$0]  %s1806, 256, %s6, [#allocation4], 128, 128, 8
    $region49: #{tpu_custom_call.1} parent=1 // pred_fallthru
      _
    // Predicated region
    $region50: #{tpu_custom_call.1} parent=1 // pred_check
      _
    $region51: #{tpu_custom_call.1} parent=1 // pred_check_branch
      %1813 = sbr.rel (0) target = $region53
    $region52: #{tpu_custom_call.1} parent=1 // pred_region
      %1814 = dma.done [#allocation4], 256
    $region53: #{tpu_custom_call.1} parent=1 // pred_fallthru
      _
    %1815 = vsyncpa [#allocation3], 1
    %1816 = vsyncpa [#allocation6], 1
    %1817 = vsyncpa [#allocation9], 1
    %1818 = vsyncpa [#allocation4], 1

</llo_original>
